<compile_context>
chip_gen: v7x
topology: tpu7x:2x2x1
jax: 0.10.0
libtpu: 0.0.40
codegen_flags: <defaults>
</compile_context>

<pallas_src>
import functools
import math

import jax
import jax.numpy as jnp
from jax.experimental import pallas as pl
from jax.experimental.pallas import tpu as pltpu

LANE = 128
SQRT2 = math.sqrt(2.0)


# ----------------------------------------------------------------------------
# Pallas kernels
# ----------------------------------------------------------------------------
def _modconv_kernel(p_ref, w_ref, d_ref, b_ref, o_ref):
    # p_ref: (1, M, K)   bf16 style-modulated im2col patches (one batch element)
    # w_ref: (K, Cp)     bf16 flattened conv weight, Cout padded to lane width
    # d_ref: (1, 1, Cp)  f32 per-batch demodulation coefficients
    # b_ref: (1, Cp)     f32 bias
    # o_ref: (1, M, Cp)  f32 activated output
    y = jnp.dot(p_ref[0], w_ref[...], preferred_element_type=jnp.float32)
    y = y * d_ref[0] + b_ref[...]
    o_ref[0] = jnp.where(y >= 0.0, y, 0.2 * y) * jnp.float32(SQRT2)


def _modconv_torgb_kernel(p_ref, w_ref, d_ref, b_ref,
                          srgb_ref, wrgb_ref, brgb_ref,
                          feat_ref, rgb_ref):
    # Fused: modulated 3x3 conv (+demod+bias+lrelu) and modulated 1x1 toRGB.
    # The feature tile stays in registers/VMEM between the two matmuls.
    y = jnp.dot(p_ref[0], w_ref[...], preferred_element_type=jnp.float32)
    y = y * d_ref[0] + b_ref[...]
    y = jnp.where(y >= 0.0, y, 0.2 * y) * jnp.float32(SQRT2)
    feat_ref[0] = y
    xm = (y * srgb_ref[0]).astype(jnp.bfloat16)
    rgb_ref[0] = (jnp.dot(xm, wrgb_ref[...], preferred_element_type=jnp.float32)
                  + brgb_ref[...])


def modconv_pallas(patches, w_flat, demod, bias):
    N, M, K = patches.shape
    Cp = w_flat.shape[1]
    return pl.pallas_call(
        _modconv_kernel,
        out_shape=jax.ShapeDtypeStruct((N, M, Cp), jnp.float32),
        grid=(N,),
        in_specs=[
            pl.BlockSpec((1, M, K), lambda n: (n, 0, 0)),
            pl.BlockSpec((K, Cp), lambda n: (0, 0)),
            pl.BlockSpec((1, 1, Cp), lambda n: (n, 0, 0)),
            pl.BlockSpec((1, Cp), lambda n: (0, 0)),
        ],
        out_specs=pl.BlockSpec((1, M, Cp), lambda n: (n, 0, 0)),
        compiler_params=pltpu.CompilerParams(
            dimension_semantics=("parallel",)),
    )(patches, w_flat, demod, bias)


def modconv_torgb_pallas(patches, w_flat, demod, bias, srgb, wrgb, brgb):
    N, M, K = patches.shape
    Cp = w_flat.shape[1]
    return pl.pallas_call(
        _modconv_torgb_kernel,
        out_shape=(jax.ShapeDtypeStruct((N, M, Cp), jnp.float32),
                   jax.ShapeDtypeStruct((N, M, Cp), jnp.float32)),
        grid=(N,),
        in_specs=[
            pl.BlockSpec((1, M, K), lambda n: (n, 0, 0)),
            pl.BlockSpec((K, Cp), lambda n: (0, 0)),
            pl.BlockSpec((1, 1, Cp), lambda n: (n, 0, 0)),
            pl.BlockSpec((1, Cp), lambda n: (0, 0)),
            pl.BlockSpec((1, 1, Cp), lambda n: (n, 0, 0)),
            pl.BlockSpec((Cp, Cp), lambda n: (0, 0)),
            pl.BlockSpec((1, Cp), lambda n: (0, 0)),
        ],
        out_specs=(pl.BlockSpec((1, M, Cp), lambda n: (n, 0, 0)),
                   pl.BlockSpec((1, M, Cp), lambda n: (n, 0, 0))),
        compiler_params=pltpu.CompilerParams(
            dimension_semantics=("parallel",)),
    )(patches, w_flat, demod, bias, srgb, wrgb, brgb)


# ----------------------------------------------------------------------------
# JAX glue: im2col, style affine, demod, lane padding, upsampling
# ----------------------------------------------------------------------------
def _round_up_lane(c):
    return ((c + LANE - 1) // LANE) * LANE


def _pad_last(x, cp, value=0.0):
    pad = cp - x.shape[-1]
    if pad <= 0:
        return x
    cfg = [(0, 0)] * (x.ndim - 1) + [(0, pad)]
    return jnp.pad(x, cfg, constant_values=value)


def _extract_patches_3x3(x):
    # x: [N, H, W, C] NHWC, SAME padding -> [N, H*W, 9*C]
    # TODO(synk): at real StyleGAN resolutions replace this 9x im2col expansion with
    # in-kernel halo DMA + tap formation (and K-tiling for v7x's 64 MiB VMEM).
    N, H, W, C = x.shape
    xp = jnp.pad(x, ((0, 0), (1, 1), (1, 1), (0, 0)))
    cols = []
    for dh in range(3):
        for dw in range(3):
            cols.append(xp[:, dh:dh + H, dw:dw + W, :])
    patches = jnp.stack(cols, axis=-2)            # [N, H, W, 9, C]
    return patches.reshape(N, H * W, 9 * C)


def _conv_inputs(x, w_lat, p):
    """Modulate x, build bf16 im2col patches, per-batch demod, lane-padded weights."""
    N, H, W, Cin = x.shape
    styles = w_lat @ p["aff_w"] + p["aff_b"]                      # [N, Cin]
    xm = x * styles[:, None, None, :]
    patches = _extract_patches_3x3(xm).astype(jnp.bfloat16)       # [N, H*W, 9*Cin]

    weight = p["weight"]                                          # [Cout, Cin, 3, 3]
    Cout = weight.shape[0]
    Cp = _round_up_lane(Cout)
    wsq = jnp.einsum("oikl,ni->no", weight * weight, styles * styles)
    demod = jax.lax.rsqrt(wsq + 1e-8)                             # [N, Cout]
    demod = _pad_last(demod, Cp, 1.0)[:, None, :]                 # [N, 1, Cp]
    w_flat = weight.transpose(2, 3, 1, 0).reshape(9 * Cin, Cout)
    w_flat = _pad_last(w_flat, Cp).astype(jnp.bfloat16)           # [9*Cin, Cp]
    bias = _pad_last(p["bias"][None, :], Cp)                      # [1, Cp]
    return patches, w_flat, demod, bias, Cout


def _torgb_inputs(w_lat, p, cp_in):
    """toRGB (1x1 modulated conv, no demod/activation) inputs, lane-padded."""
    styles = w_lat @ p["aff_w"] + p["aff_b"]                      # [N, Cin]
    srgb = _pad_last(styles, cp_in)[:, None, :]                   # [N, 1, Cp]
    wrgb = p["weight"].transpose(1, 0)                            # [Cin, 3]
    wrgb = _pad_last(wrgb, LANE)                                  # [Cin, 128]
    wrgb = jnp.pad(wrgb, ((0, cp_in - wrgb.shape[0]), (0, 0)))    # [Cp, 128]
    wrgb = wrgb.astype(jnp.bfloat16)
    brgb = _pad_last(p["bias"][None, :], LANE)                    # [1, 128]
    return srgb, wrgb, brgb


def _modconv_ref(patches, w_flat, demod, bias):
    # Pure-JAX reference of the identical math (same bf16 inputs, f32 accumulate).
    y = jnp.einsum("nmk,kc->nmc", patches, w_flat,
                   preferred_element_type=jnp.float32)
    y = y * demod + bias
    return jnp.where(y >= 0.0, y, 0.2 * y) * jnp.float32(SQRT2)


def upsample2x(x):
    return jnp.repeat(jnp.repeat(x, 2, axis=1), 2, axis=2)


# ----------------------------------------------------------------------------
# Synthesis network + ReferenceModel-style forward
# ----------------------------------------------------------------------------
def synthesis(w_latents, params, *, use_pallas=True):
    # w_latents: [N, num_ws, w_dim]
    N = w_latents.shape[0]
    const = params["const"]
    x = jnp.broadcast_to(const[None], (N,) + const.shape)         # [N, 4, 4, C0]
    H0, W0 = x.shape[1], x.shape[2]

    # conv0 (modulated 3x3 + demod + bias + leaky-ReLU)
    p0, w0, d0, b0, c0_out = _conv_inputs(x, w_latents[:, 0], params["conv0"])
    y0 = modconv_pallas(p0, w0, d0, b0) if use_pallas else _modconv_ref(p0, w0, d0, b0)
    x0 = y0[:, :, :c0_out].reshape(N, H0, W0, c0_out)

    # nearest-neighbor 2x upsample
    x1 = upsample2x(x0)                                           # [N, 8, 8, C]
    H1, W1 = x1.shape[1], x1.shape[2]

    # conv1 + toRGB fused in one kernel
    p1, w1, d1, b1, c1_out = _conv_inputs(x1, w_latents[:, 1], params["conv1"])
    Cp = w1.shape[1]
    srgb, wrgb, brgb = _torgb_inputs(w_latents[:, 2], params["torgb"], Cp)
    if use_pallas:
        featp, rgbp = modconv_torgb_pallas(p1, w1, d1, b1, srgb, wrgb, brgb)
    else:
        featp = _modconv_ref(p1, w1, d1, b1)
        xm = (featp * srgb).astype(jnp.bfloat16)
        rgbp = jnp.einsum("nmc,cd->nmd", xm, wrgb,
                          preferred_element_type=jnp.float32) + brgb

    feat = featp[:, :, :c1_out].reshape(N, H1, W1, c1_out)
    img = rgbp[:, :, :3].reshape(N, H1, W1, 3)
    # NHWC -> NCHW (PyTorch image convention)
    return jnp.transpose(img, (0, 3, 1, 2)), jnp.transpose(feat, (0, 3, 1, 2))


def reference_model_forward(w_latents, params, mode="output"):
    """Mirrors ReferenceModel.forward: 'target' -> traced target-layer features
    (conv1 here), 'output' -> final image, 'all' -> (output, features)."""
    img, feat = synthesis(w_latents, params)
    if mode == "target":
        return feat
    elif mode == "output":
        return img
    elif mode == "all":
        return (img, feat)
    raise KeyError(f"mode should be 'target', 'output' or 'all', got {mode}")


# ----------------------------------------------------------------------------
# Deterministic parameter init
# ----------------------------------------------------------------------------
def init_params(key, *, w_dim=32, c0=32, c1=32):
    ks = jax.random.split(key, 4)

    def conv_params(k, cin, cout, wdim):
        k1, k2 = jax.random.split(k)
        return {
            "aff_w": jax.random.normal(k1, (wdim, cin), jnp.float32) / math.sqrt(wdim),
            "aff_b": jnp.ones((cin,), jnp.float32),          # StyleGAN bias-init = 1
            "weight": jax.random.normal(k2, (cout, cin, 3, 3), jnp.float32)
                      / math.sqrt(cin * 9),
            "bias": jnp.zeros((cout,), jnp.float32),
        }

    k_rgb1, k_rgb2 = jax.random.split(ks[3])
    return {
        "const": jax.random.normal(ks[0], (4, 4, c0), jnp.float32),  # NHWC const
        "conv0": conv_params(ks[1], c0, c1, w_dim),
        "conv1": conv_params(ks[2], c1, c1, w_dim),
        "torgb": {
            "aff_w": jax.random.normal(k_rgb1, (w_dim, c1), jnp.float32) / math.sqrt(w_dim),
            "aff_b": jnp.ones((c1,), jnp.float32),
            "weight": jax.random.normal(k_rgb2, (3, c1), jnp.float32) / math.sqrt(c1),
            "bias": jnp.zeros((3,), jnp.float32),
        },
    }


if __name__ == "__main__":
    key = jax.random.PRNGKey(0)
    kp, kw = jax.random.split(key)

    batch, num_ws, w_dim = 2, 3, 32
    params = init_params(kp, w_dim=w_dim, c0=32, c1=32)
    w_latents = jax.random.normal(kw, (batch, num_ws, w_dim), jnp.float32)

    # Pallas path ('all' exercises both the output and traced-feature branches).
    fwd = jax.jit(lambda w: reference_model_forward(w, params, mode="all"))
    img, feat = jax.block_until_ready(fwd(w_latents))
    assert img.shape == (batch, 3, 8, 8), img.shape
    assert feat.shape == (batch, 32, 8, 8), feat.shape

    # Pure-JAX reference of the identical math (same bf16 matmul inputs).
    img_ref, feat_ref = synthesis(w_latents, params, use_pallas=False)
    assert jnp.allclose(img, img_ref, atol=5e-2, rtol=5e-2), \
        float(jnp.max(jnp.abs(img - img_ref)))
    assert jnp.allclose(feat, feat_ref, atol=5e-2, rtol=5e-2), \
        float(jnp.max(jnp.abs(feat - feat_ref)))

    # TODO(synk): the real netG comes from networks.define_G (external StyleGAN2
    # checkpoint); this script substitutes a compact deterministic synthesis net.
    print("KERNEL_OK")
</pallas_src>

<mosaic_0001>
module attributes {stable_mosaic.version = 11 : i64} {
  func.func @_modconv_kernel(%arg0: i32, %arg1: memref<1x16x288xbf16, #tpu.memory_space<vmem>>, %arg2: memref<288x128xbf16, #tpu.memory_space<vmem>>, %arg3: memref<1x1x128xf32, #tpu.memory_space<vmem>>, %arg4: memref<1x128xf32, #tpu.memory_space<vmem>>, %arg5: memref<1x16x128xf32, #tpu.memory_space<vmem>>) attributes {dimension_semantics = [#tpu.dimension_semantics<parallel>], iteration_bounds = array<i64: 2>, scalar_prefetch = 0 : i64, scratch_operands = 0 : i64, tpu.core_type = #tpu.core_type<tc>, window_params = [{transform_indices = @transform_0, window_bounds = array<i64: 1, 16, 288>}, {pipeline_mode = #tpu.pipeline_mode<synchronous>, transform_indices = @transform_1, window_bounds = array<i64: 288, 128>}, {transform_indices = @transform_2, window_bounds = array<i64: 1, 1, 128>}, {pipeline_mode = #tpu.pipeline_mode<synchronous>, transform_indices = @transform_3, window_bounds = array<i64: 1, 128>}, {transform_indices = @transform_4, window_bounds = array<i64: 1, 16, 128>}]} {
    %c0 = arith.constant 0 : index
    %c0_0 = arith.constant 0 : index
    %c0_1 = arith.constant 0 : index
    %0 = vector.load %arg1[%c0, %c0_0, %c0_1] : memref<1x16x288xbf16, #tpu.memory_space<vmem>>, vector<1x16x288xbf16>
    %1 = vector.shape_cast %0 : vector<1x16x288xbf16> to vector<16x288xbf16>
    %c0_2 = arith.constant 0 : index
    %c0_3 = arith.constant 0 : index
    %2 = vector.load %arg2[%c0_2, %c0_3] : memref<288x128xbf16, #tpu.memory_space<vmem>>, vector<288x128xbf16>
    %cst = arith.constant dense<0.000000e+00> : vector<16x128xf32>
    %3 = tpu.matmul %1, %2, %cst {dimension_numbers = #tpu.dot_dimension_numbers<[1], [0], [0], [1], [0, 0, 1, 1], [], []>} : vector<16x288xbf16>, vector<288x128xbf16>, vector<16x128xf32> -> vector<16x128xf32>
    %c0_4 = arith.constant 0 : index
    %c0_5 = arith.constant 0 : index
    %c0_6 = arith.constant 0 : index
    %4 = vector.load %arg3[%c0_4, %c0_5, %c0_6] : memref<1x1x128xf32, #tpu.memory_space<vmem>>, vector<1x1x128xf32>
    %5 = vector.shape_cast %4 : vector<1x1x128xf32> to vector<1x128xf32>
    %6 = vector.broadcast %5 : vector<1x128xf32> to vector<16x128xf32>
    %7 = arith.mulf %3, %6 : vector<16x128xf32>
    %c0_7 = arith.constant 0 : index
    %c0_8 = arith.constant 0 : index
    %8 = vector.load %arg4[%c0_7, %c0_8] : memref<1x128xf32, #tpu.memory_space<vmem>>, vector<1x128xf32>
    %9 = vector.broadcast %8 : vector<1x128xf32> to vector<16x128xf32>
    %10 = arith.addf %7, %9 : vector<16x128xf32>
    %cst_9 = arith.constant 0.000000e+00 : f32
    %11 = vector.broadcast %cst_9 : f32 to vector<16x128xf32>
    %12 = arith.cmpf oge, %10, %11 : vector<16x128xf32>
    %cst_10 = arith.constant 2.000000e-01 : f32
    %13 = vector.broadcast %cst_10 : f32 to vector<16x128xf32>
    %14 = arith.mulf %13, %10 : vector<16x128xf32>
    %15 = arith.select %12, %10, %14 : vector<16x128xi1>, vector<16x128xf32>
    %cst_11 = arith.constant 1.41421354 : f32
    %16 = vector.broadcast %cst_11 : f32 to vector<16x128xf32>
    %17 = arith.mulf %15, %16 : vector<16x128xf32>
    %c0_12 = arith.constant 0 : index
    %c0_13 = arith.constant 0 : index
    %c0_14 = arith.constant 0 : index
    %18 = vector.load %arg5[%c0_12, %c0_13, %c0_14] : memref<1x16x128xf32, #tpu.memory_space<vmem>>, vector<1x16x128xf32>
    %19 = vector.shape_cast %18 : vector<1x16x128xf32> to vector<16x128xf32>
    %20 = vector.shape_cast %17 : vector<16x128xf32> to vector<1x16x128xf32>
    tpu.vector_store %arg5[%c0_12, %c0_13, %c0_14], %20 {strides = array<i32>} : memref<1x16x128xf32, #tpu.memory_space<vmem>>, vector<1x16x128xf32>,
    return
  }
  func.func @transform_0(%arg0: i32) -> (i32, i32, i32) {
    %c0_i32 = arith.constant 0 : i32
    %c0_i32_0 = arith.constant 0 : i32
    %c0_i32_1 = arith.constant 0 : i32
    return %arg0, %c0_i32, %c0_i32_0 : i32, i32, i32
  }
  func.func @transform_1(%arg0: i32) -> (i32, i32) {
    %c0_i32 = arith.constant 0 : i32
    %c0_i32_0 = arith.constant 0 : i32
    %c0_i32_1 = arith.constant 0 : i32
    return %c0_i32, %c0_i32_0 : i32, i32
  }
  func.func @transform_2(%arg0: i32) -> (i32, i32, i32) {
    %c0_i32 = arith.constant 0 : i32
    %c0_i32_0 = arith.constant 0 : i32
    %c0_i32_1 = arith.constant 0 : i32
    return %arg0, %c0_i32, %c0_i32_0 : i32, i32, i32
  }
  func.func @transform_3(%arg0: i32) -> (i32, i32) {
    %c0_i32 = arith.constant 0 : i32
    %c0_i32_0 = arith.constant 0 : i32
    %c0_i32_1 = arith.constant 0 : i32
    return %c0_i32, %c0_i32_0 : i32, i32
  }
  func.func @transform_4(%arg0: i32) -> (i32, i32, i32) {
    %c0_i32 = arith.constant 0 : i32
    %c0_i32_0 = arith.constant 0 : i32
    %c0_i32_1 = arith.constant 0 : i32
    return %arg0, %c0_i32, %c0_i32_0 : i32, i32, i32
  }
}

module attributes {stable_mosaic.version = 11 : i64} {
  func.func @_modconv_torgb_kernel(%arg0: i32, %arg1: memref<1x64x288xbf16, #tpu.memory_space<vmem>>, %arg2: memref<288x128xbf16, #tpu.memory_space<vmem>>, %arg3: memref<1x1x128xf32, #tpu.memory_space<vmem>>, %arg4: memref<1x128xf32, #tpu.memory_space<vmem>>, %arg5: memref<1x1x128xf32, #tpu.memory_space<vmem>>, %arg6: memref<128x128xbf16, #tpu.memory_space<vmem>>, %arg7: memref<1x128xf32, #tpu.memory_space<vmem>>, %arg8: memref<1x64x128xf32, #tpu.memory_space<vmem>>, %arg9: memref<1x64x128xf32, #tpu.memory_space<vmem>>) attributes {dimension_semantics = [#tpu.dimension_semantics<parallel>], iteration_bounds = array<i64: 2>, scalar_prefetch = 0 : i64, scratch_operands = 0 : i64, tpu.core_type = #tpu.core_type<tc>, window_params = [{transform_indices = @transform_0, window_bounds = array<i64: 1, 64, 288>}, {pipeline_mode = #tpu.pipeline_mode<synchronous>, transform_indices = @transform_1, window_bounds = array<i64: 288, 128>}, {transform_indices = @transform_2, window_bounds = array<i64: 1, 1, 128>}, {pipeline_mode = #tpu.pipeline_mode<synchronous>, transform_indices = @transform_3, window_bounds = array<i64: 1, 128>}, {transform_indices = @transform_4, window_bounds = array<i64: 1, 1, 128>}, {pipeline_mode = #tpu.pipeline_mode<synchronous>, transform_indices = @transform_5, window_bounds = array<i64: 128, 128>}, {pipeline_mode = #tpu.pipeline_mode<synchronous>, transform_indices = @transform_6, window_bounds = array<i64: 1, 128>}, {transform_indices = @transform_7, window_bounds = array<i64: 1, 64, 128>}, {transform_indices = @transform_8, window_bounds = array<i64: 1, 64, 128>}]} {
    %c0 = arith.constant 0 : index
    %c0_0 = arith.constant 0 : index
    %c0_1 = arith.constant 0 : index
    %0 = vector.load %arg1[%c0, %c0_0, %c0_1] : memref<1x64x288xbf16, #tpu.memory_space<vmem>>, vector<1x64x288xbf16>
    %1 = vector.shape_cast %0 : vector<1x64x288xbf16> to vector<64x288xbf16>
    %c0_2 = arith.constant 0 : index
    %c0_3 = arith.constant 0 : index
    %2 = vector.load %arg2[%c0_2, %c0_3] : memref<288x128xbf16, #tpu.memory_space<vmem>>, vector<288x128xbf16>
    %cst = arith.constant dense<0.000000e+00> : vector<64x128xf32>
    %3 = tpu.matmul %1, %2, %cst {dimension_numbers = #tpu.dot_dimension_numbers<[1], [0], [0], [1], [0, 0, 1, 1], [], []>} : vector<64x288xbf16>, vector<288x128xbf16>, vector<64x128xf32> -> vector<64x128xf32>
    %c0_4 = arith.constant 0 : index
    %c0_5 = arith.constant 0 : index
    %c0_6 = arith.constant 0 : index
    %4 = vector.load %arg3[%c0_4, %c0_5, %c0_6] : memref<1x1x128xf32, #tpu.memory_space<vmem>>, vector<1x1x128xf32>
    %5 = vector.shape_cast %4 : vector<1x1x128xf32> to vector<1x128xf32>
    %6 = vector.broadcast %5 : vector<1x128xf32> to vector<64x128xf32>
    %7 = arith.mulf %3, %6 : vector<64x128xf32>
    %c0_7 = arith.constant 0 : index
    %c0_8 = arith.constant 0 : index
    %8 = vector.load %arg4[%c0_7, %c0_8] : memref<1x128xf32, #tpu.memory_space<vmem>>, vector<1x128xf32>
    %9 = vector.broadcast %8 : vector<1x128xf32> to vector<64x128xf32>
    %10 = arith.addf %7, %9 : vector<64x128xf32>
    %cst_9 = arith.constant 0.000000e+00 : f32
    %11 = vector.broadcast %cst_9 : f32 to vector<64x128xf32>
    %12 = arith.cmpf oge, %10, %11 : vector<64x128xf32>
    %cst_10 = arith.constant 2.000000e-01 : f32
    %13 = vector.broadcast %cst_10 : f32 to vector<64x128xf32>
    %14 = arith.mulf %13, %10 : vector<64x128xf32>
    %15 = arith.select %12, %10, %14 : vector<64x128xi1>, vector<64x128xf32>
    %cst_11 = arith.constant 1.41421354 : f32
    %16 = vector.broadcast %cst_11 : f32 to vector<64x128xf32>
    %17 = arith.mulf %15, %16 : vector<64x128xf32>
    %c0_12 = arith.constant 0 : index
    %c0_13 = arith.constant 0 : index
    %c0_14 = arith.constant 0 : index
    %18 = vector.load %arg8[%c0_12, %c0_13, %c0_14] : memref<1x64x128xf32, #tpu.memory_space<vmem>>, vector<1x64x128xf32>
    %19 = vector.shape_cast %18 : vector<1x64x128xf32> to vector<64x128xf32>
    %20 = vector.shape_cast %17 : vector<64x128xf32> to vector<1x64x128xf32>
    tpu.vector_store %arg8[%c0_12, %c0_13, %c0_14], %20 {strides = array<i32>} : memref<1x64x128xf32, #tpu.memory_space<vmem>>, vector<1x64x128xf32>,
    %c0_15 = arith.constant 0 : index
    %c0_16 = arith.constant 0 : index
    %c0_17 = arith.constant 0 : index
    %21 = vector.load %arg5[%c0_15, %c0_16, %c0_17] : memref<1x1x128xf32, #tpu.memory_space<vmem>>, vector<1x1x128xf32>
    %22 = vector.shape_cast %21 : vector<1x1x128xf32> to vector<1x128xf32>
    %23 = vector.broadcast %22 : vector<1x128xf32> to vector<64x128xf32>
    %24 = arith.mulf %17, %23 : vector<64x128xf32>
    %25 = arith.truncf %24 : vector<64x128xf32> to vector<64x128xbf16>
    %c0_18 = arith.constant 0 : index
    %c0_19 = arith.constant 0 : index
    %26 = vector.load %arg6[%c0_18, %c0_19] : memref<128x128xbf16, #tpu.memory_space<vmem>>, vector<128x128xbf16>
    %cst_20 = arith.constant dense<0.000000e+00> : vector<64x128xf32>
    %27 = tpu.matmul %25, %26, %cst_20 {dimension_numbers = #tpu.dot_dimension_numbers<[1], [0], [0], [1], [0, 0, 1, 1], [], []>} : vector<64x128xbf16>, vector<128x128xbf16>, vector<64x128xf32> -> vector<64x128xf32>
    %c0_21 = arith.constant 0 : index
    %c0_22 = arith.constant 0 : index
    %28 = vector.load %arg7[%c0_21, %c0_22] : memref<1x128xf32, #tpu.memory_space<vmem>>, vector<1x128xf32>
    %29 = vector.broadcast %28 : vector<1x128xf32> to vector<64x128xf32>
    %30 = arith.addf %27, %29 : vector<64x128xf32>
    %c0_23 = arith.constant 0 : index
    %c0_24 = arith.constant 0 : index
    %c0_25 = arith.constant 0 : index
    %31 = vector.load %arg9[%c0_23, %c0_24, %c0_25] : memref<1x64x128xf32, #tpu.memory_space<vmem>>, vector<1x64x128xf32>
    %32 = vector.shape_cast %31 : vector<1x64x128xf32> to vector<64x128xf32>
    %33 = vector.shape_cast %30 : vector<64x128xf32> to vector<1x64x128xf32>
    tpu.vector_store %arg9[%c0_23, %c0_24, %c0_25], %33 {strides = array<i32>} : memref<1x64x128xf32, #tpu.memory_space<vmem>>, vector<1x64x128xf32>,
    return
  }
  func.func @transform_0(%arg0: i32) -> (i32, i32, i32) {
    %c0_i32 = arith.constant 0 : i32
    %c0_i32_0 = arith.constant 0 : i32
    %c0_i32_1 = arith.constant 0 : i32
    return %arg0, %c0_i32, %c0_i32_0 : i32, i32, i32
  }
  func.func @transform_1(%arg0: i32) -> (i32, i32) {
    %c0_i32 = arith.constant 0 : i32
    %c0_i32_0 = arith.constant 0 : i32
    %c0_i32_1 = arith.constant 0 : i32
    return %c0_i32, %c0_i32_0 : i32, i32
  }
  func.func @transform_2(%arg0: i32) -> (i32, i32, i32) {
    %c0_i32 = arith.constant 0 : i32
    %c0_i32_0 = arith.constant 0 : i32
    %c0_i32_1 = arith.constant 0 : i32
    return %arg0, %c0_i32, %c0_i32_0 : i32, i32, i32
  }
  func.func @transform_3(%arg0: i32) -> (i32, i32) {
    %c0_i32 = arith.constant 0 : i32
    %c0_i32_0 = arith.constant 0 : i32
    %c0_i32_1 = arith.constant 0 : i32
    return %c0_i32, %c0_i32_0 : i32, i32
  }
  func.func @transform_4(%arg0: i32) -> (i32, i32, i32) {
    %c0_i32 = arith.constant 0 : i32
    %c0_i32_0 = arith.constant 0 : i32
    %c0_i32_1 = arith.constant 0 : i32
    return %arg0, %c0_i32, %c0_i32_0 : i32, i32, i32
  }
  func.func @transform_5(%arg0: i32) -> (i32, i32) {
    %c0_i32 = arith.constant 0 : i32
    %c0_i32_0 = arith.constant 0 : i32
    %c0_i32_1 = arith.constant 0 : i32
    return %c0_i32, %c0_i32_0 : i32, i32
  }
  func.func @transform_6(%arg0: i32) -> (i32, i32) {
    %c0_i32 = arith.constant 0 : i32
    %c0_i32_0 = arith.constant 0 : i32
    %c0_i32_1 = arith.constant 0 : i32
    return %c0_i32, %c0_i32_0 : i32, i32
  }
  func.func @transform_7(%arg0: i32) -> (i32, i32, i32) {
    %c0_i32 = arith.constant 0 : i32
    %c0_i32_0 = arith.constant 0 : i32
    %c0_i32_1 = arith.constant 0 : i32
    return %arg0, %c0_i32, %c0_i32_0 : i32, i32, i32
  }
  func.func @transform_8(%arg0: i32) -> (i32, i32, i32) {
    %c0_i32 = arith.constant 0 : i32
    %c0_i32_0 = arith.constant 0 : i32
    %c0_i32_1 = arith.constant 0 : i32
    return %arg0, %c0_i32, %c0_i32_0 : i32, i32, i32
  }
}

</mosaic_0001>

<llo_original>
// kernel: _lambda_.2
$region0: #{_lambda_.2}
  #allocation0 [shape = 'u32[]', space=smem, size = 0x4, offset = 0x4, fixed_abs, tag = 'smem constant byte address 0x4 - core index']
  #allocation1 [shape = 'u32[144,128]{1,0:T(1,128)}', space=vmem, size = 0x12000, scoped, tag = 'internal scratch']
  %s0 = inlined_call_operand.vmem [shape: bf16[2,16,288], index: 0, kind: input, shape index: {}]
  %s1 = inlined_call_operand.vmem [shape: bf16[288,128], index: 1, kind: input, shape index: {}]
  %s2 = inlined_call_operand.vmem [shape: f32[2,1,128], index: 2, kind: input, shape index: {}]
  %s3 = inlined_call_operand.vmem [shape: f32[1,128], index: 3, kind: input, shape index: {}]
  %s4 = inlined_call_operand.vmem [shape: f32[2,16,128], index: 4, kind: output, shape index: {}]
  %s5 = sld [smem:[#allocation0]]
  $region49: #{_lambda_.2} parent=0
    _
  %s7 = ssub.s32 1, %s5
  %s8 = scalar_select 0, %s7, %s5
  loop: start=0, step=1, limit=4
  $region2: #{_lambda_.2} parent=0 // loop_pre_header
    _
  $region3: #{_lambda_.2} parent=0 // loop_header
    %s10 = sphi 0, %s14
    %p11 = scmp.ge.s32.totalorder %s10, 4
    %s20 = sphi 0, %s22
    %s23 = sphi 0, %s20
    %s24 = sphi 0, %s23
    %s40 = sphi 0, %s24
    %s44 = sphi 0, %s44
    %s46 = sphi 0, %s44
    %s47 = sphi 0, %s46
    %s61 = sphi 0, %s47
    %s67 = sphi 0, %s69
    %s70 = sphi 0, %s67
    %s71 = sphi 0, %s70
    %s87 = sphi 0, %s71
    %s91 = sphi 0, %s91
    %s93 = sphi 0, %s91
    %s94 = sphi 0, %s93
    %s108 = sphi 0, %s94
    %s114 = sphi 0, %s116
    %s117 = sphi 0, %s114
    %s118 = sphi 0, %s117
    %s134 = sphi 0, %s118
  $region4: #{_lambda_.2} parent=0 // loop_header_branch
    %13 = sbr.rel (%p11) target = $region8
  $region5: #{_lambda_.2} parent=0 // loop_body
    %s15 = ssub.s32 %s10, 1
    %s16 = ssub.s32 %s10, 2
    %s17 = sadd.s32 %s10, 1
    %s18 = ssub.s32 %s10, %s17
    %p19 = scmp.eq.s32.totalorder %s18, 0
    %s21 = sadd.s32 %s20, 1
    %s22 = scalar_select %p19, %s20, %s21
    %p25 = pneg %p19
    %p26 = scmp.eq.s32.totalorder %s10, 1
    %p27 = por %p25, %p26
    %p28 = scmp.ne.s32.totalorder %s20, %s23
    %p29 = scmp.eq.s32.totalorder %s10, 0
    %p30 = por %p28, %p29
    %p31 = scmp.ne.s32.totalorder %s20, %s23
    %p32 = scmp.eq.s32.totalorder %s15, 1
    %p33 = por %p31, %p32
    %p34 = scmp.ne.s32.totalorder %s23, %s24
    %p35 = scmp.eq.s32.totalorder %s15, 0
    %p36 = por %p34, %p35
    %p37 = scmp.ne.s32.totalorder %s23, %s24
    %p38 = scmp.eq.s32.totalorder %s16, 1
    %p39 = por %p37, %p38
    %p41 = scmp.ne.s32.totalorder %s24, %s40
    %p42 = scmp.eq.s32.totalorder %s16, 0
    %p43 = por %p41, %p42
    %s45 = sadd.s32 %s44, 1
    %p48 = scmp.eq.s32.totalorder %s10, 1
    %p49 = scmp.ne.s32.totalorder %s44, %s46
    %p50 = scmp.eq.s32.totalorder %s10, 0
    %p51 = por %p49, %p50
    %p52 = scmp.ne.s32.totalorder %s44, %s46
    %p53 = scmp.eq.s32.totalorder %s15, 1
    %p54 = por %p52, %p53
    %p55 = scmp.ne.s32.totalorder %s46, %s47
    %p56 = scmp.eq.s32.totalorder %s15, 0
    %p57 = por %p55, %p56
    %p58 = scmp.ne.s32.totalorder %s46, %s47
    %p59 = scmp.eq.s32.totalorder %s16, 1
    %p60 = por %p58, %p59
    %p62 = scmp.ne.s32.totalorder %s47, %s61
    %p63 = scmp.eq.s32.totalorder %s16, 0
    %p64 = por %p62, %p63
    %s65 = ssub.s32 %s10, %s17
    %p66 = scmp.eq.s32.totalorder %s65, 0
    %s68 = sadd.s32 %s67, 1
    %s69 = scalar_select %p66, %s67, %s68
    %p72 = pneg %p66
    %p73 = scmp.eq.s32.totalorder %s10, 1
    %p74 = por %p72, %p73
    %p75 = scmp.ne.s32.totalorder %s67, %s70
    %p76 = scmp.eq.s32.totalorder %s10, 0
    %p77 = por %p75, %p76
    %p78 = scmp.ne.s32.totalorder %s67, %s70
    %p79 = scmp.eq.s32.totalorder %s15, 1
    %p80 = por %p78, %p79
    %p81 = scmp.ne.s32.totalorder %s70, %s71
    %p82 = scmp.eq.s32.totalorder %s15, 0
    %p83 = por %p81, %p82
    %p84 = scmp.ne.s32.totalorder %s70, %s71
    %p85 = scmp.eq.s32.totalorder %s16, 1
    %p86 = por %p84, %p85
    %p88 = scmp.ne.s32.totalorder %s71, %s87
    %p89 = scmp.eq.s32.totalorder %s16, 0
    %p90 = por %p88, %p89
    %s92 = sadd.s32 %s91, 1
    %p95 = scmp.eq.s32.totalorder %s10, 1
    %p96 = scmp.ne.s32.totalorder %s91, %s93
    %p97 = scmp.eq.s32.totalorder %s10, 0
    %p98 = por %p96, %p97
    %p99 = scmp.ne.s32.totalorder %s91, %s93
    %p100 = scmp.eq.s32.totalorder %s15, 1
    %p101 = por %p99, %p100
    %p102 = scmp.ne.s32.totalorder %s93, %s94
    %p103 = scmp.eq.s32.totalorder %s15, 0
    %p104 = por %p102, %p103
    %p105 = scmp.ne.s32.totalorder %s93, %s94
    %p106 = scmp.eq.s32.totalorder %s16, 1
    %p107 = por %p105, %p106
    %p109 = scmp.ne.s32.totalorder %s94, %s108
    %p110 = scmp.eq.s32.totalorder %s16, 0
    %p111 = por %p109, %p110
    %s112 = ssub.s32 %s10, %s17
    %p113 = scmp.eq.s32.totalorder %s112, 0
    %s115 = sadd.s32 %s114, 1
    %s116 = scalar_select %p113, %s114, %s115
    %p119 = pneg %p113
    %p120 = scmp.eq.s32.totalorder %s10, 1
    %p121 = por %p119, %p120
    %p122 = scmp.ne.s32.totalorder %s114, %s117
    %p123 = scmp.eq.s32.totalorder %s10, 0
    %p124 = por %p122, %p123
    %p125 = scmp.ne.s32.totalorder %s114, %s117
    %p126 = scmp.eq.s32.totalorder %s15, 1
    %p127 = por %p125, %p126
    %p128 = scmp.ne.s32.totalorder %s117, %s118
    %p129 = scmp.eq.s32.totalorder %s15, 0
    %p130 = por %p128, %p129
    %p131 = scmp.ne.s32.totalorder %s117, %s118
    %p132 = scmp.eq.s32.totalorder %s16, 1
    %p133 = por %p131, %p132
    %p135 = scmp.ne.s32.totalorder %s118, %s134
    %p136 = scmp.eq.s32.totalorder %s16, 0
    %p137 = por %p135, %p136
    %p138 = scmp.le.s32.totalorder 1, %s10
    %p139 = scmp.lt.s32.totalorder %s10, 3
    %p140 = pnand %p138, %p139
    %p141 = pneg %p140
    // Predicated region
    $region9: #{_lambda_.2} parent=5 // pred_check
      _
    $region10: #{_lambda_.2} parent=5 // pred_check_branch
      %143 = sbr.rel (%p140) target = $region12
    $region11: #{_lambda_.2} parent=5 // pred_region
      %s144 = ssub.s32 %s10, 1
      // Predicated region
      $region13: #{_lambda_.2} parent=11 // pred_check
        %p145 = pneg %p57
      $region14: #{_lambda_.2} parent=11 // pred_check_branch
        %147 = sbr.rel (%p145) target = $region16
      $region15: #{_lambda_.2} parent=11 // pred_region
        _
      $region16: #{_lambda_.2} parent=11 // pred_fallthru
        _
      // Predicated region
      $region17: #{_lambda_.2} parent=11 // pred_check
        %p148 = pneg %p104
      $region18: #{_lambda_.2} parent=11 // pred_check_branch
        %150 = sbr.rel (%p148) target = $region20
      $region19: #{_lambda_.2} parent=11 // pred_region
        _
      $region20: #{_lambda_.2} parent=11 // pred_fallthru
        _
    $region12: #{_lambda_.2} parent=5 // pred_fallthru
      _
    %p151 = scmp.lt.s32.totalorder %s10, 2
    // Predicated region
    $region21: #{_lambda_.2} parent=5 // pred_check
      %p152 = pneg %p151
    $region22: #{_lambda_.2} parent=5 // pred_check_branch
      %154 = sbr.rel (%p152) target = $region24
    $region23: #{_lambda_.2} parent=5 // pred_region
      // Predicated region
      $region25: #{_lambda_.2} parent=23 // pred_check
        %p155 = pneg %p30
      $region26: #{_lambda_.2} parent=23 // pred_check_branch
        %157 = sbr.rel (%p155) target = $region28
      $region27: #{_lambda_.2} parent=23 // pred_region
        %p158 = scmp.lt.s32.totalorder %s10, 1
        %s159 = scalar_select %p158, %s10, 1
        %s160 = smul.addr %s159, 6
        %s161 = smul.addr %s160, 4
        %s162 = scalar_lea.vmem %s0, %s161
      $region28: #{_lambda_.2} parent=23 // pred_fallthru
        _
      // Predicated region
      $region29: #{_lambda_.2} parent=23 // pred_check
        %p163 = pneg %p77
      $region30: #{_lambda_.2} parent=23 // pred_check_branch
        %165 = sbr.rel (%p163) target = $region32
      $region31: #{_lambda_.2} parent=23 // pred_region
        %p166 = scmp.lt.s32.totalorder %s10, 1
        %s167 = scalar_select %p166, %s10, 1
        %s168 = scalar_lea.vmem %s2, %s167
      $region32: #{_lambda_.2} parent=23 // pred_fallthru
        _
    $region24: #{_lambda_.2} parent=5 // pred_fallthru
      _
    %p169 = scmp.le.s32.totalorder 1, %s10
    %p170 = scmp.lt.s32.totalorder %s10, 3
    %p171 = pnand %p169, %p170
    %p172 = pneg %p171
    // Predicated region
    $region33: #{_lambda_.2} parent=5 // pred_check
      _
    $region34: #{_lambda_.2} parent=5 // pred_check_branch
      %174 = sbr.rel (%p171) target = $region36
    $region35: #{_lambda_.2} parent=5 // pred_region
      %s175 = ssub.s32 %s10, 1
      %p176 = scmp.lt.s32.totalorder %s15, 1
      %s177 = scalar_select %p176, %s15, 1
      %s178 = smul.addr %s177, 6
      %s179 = smul.addr %s178, 4
      %s180 = scalar_lea.vmem %s0, %s179
      %p181 = pneg %p36
      %p182 = pneg %p33
      %p183 = pneg %p57
      %p184 = pneg %p54
      %p185 = scmp.lt.s32.totalorder %s15, 1
      %s186 = scalar_select %p185, %s15, 1
      %s187 = scalar_lea.vmem %s2, %s186
      %p188 = pneg %p83
      %p189 = pneg %p80
      %p190 = pneg %p104
      %p191 = pneg %p101
      %p192 = pneg %p130
      %p193 = pneg %p127
      %p194 = scmp.lt.s32.totalorder %s15, 1
      %s195 = scalar_select %p194, %s15, 1
      %s196 = smul.addr %s195, 2
      %s197 = smul.addr %s196, 8
      %s198 = scalar_lea.vmem %s4, %s197
      %p199 = scmp.lt.s32.totalorder %s15, 1
      %s200 = scalar_select %p199, %s15, 1
      %s201 = smul.addr %s200, 6
      %s202 = smul.addr %s201, 4
      %s203 = scalar_lea.vmem %s0, %s202
      %p204 = scmp.lt.s32.totalorder %s15, 1
      %s205 = scalar_select %p204, %s15, 1
      %s206 = scalar_lea.vmem %s2, %s205
      %p207 = scmp.lt.s32.totalorder %s15, 1
      %s208 = scalar_select %p207, %s15, 1
      %s209 = smul.addr %s208, 2
      %s210 = smul.addr %s209, 8
      %s211 = scalar_lea.vmem %s4, %s210
      %v213 = vld [vmem:[%s203] sm:$0xff]
      %v214 = vld [vmem:[%s203 + $0x8] sm:$0xf]
      %v215 = vld [vmem:[%s203 + $0xc] sm:$0xff]
      %v216 = vld [vmem:[%s203 + $0x14] sm:$0xf]
      %v217 = vld [vmem:[%s1] sm:$0xf]
      %v218 = vld [vmem:[%s1 + $0x4] sm:$0xf]
      %v219 = vld [vmem:[%s1 + $0x8] sm:$0xf]
      %v220 = vld [vmem:[%s1 + $0xc] sm:$0xf]
      %v221 = vld [vmem:[%s1 + $0x10] sm:$0xf]
      %v222 = vld [vmem:[%s1 + $0x14] sm:$0xf]
      %v223 = vld [vmem:[%s1 + $0x18] sm:$0xf]
      %v224 = vld [vmem:[%s1 + $0x1c] sm:$0xf]
      %v225 = vld [vmem:[%s1 + $0x20] sm:$0xf]
      %v226 = vld [vmem:[%s1 + $0x24] sm:$0xf]
      %v227 = vld [vmem:[%s1 + $0x28] sm:$0xf]
      %v228 = vld [vmem:[%s1 + $0x2c] sm:$0xf]
      %v229 = vld [vmem:[%s1 + $0x30] sm:$0xf]
      %v230 = vld [vmem:[%s1 + $0x34] sm:$0xf]
      %v231 = vld [vmem:[%s1 + $0x38] sm:$0xf]
      %v232 = vld [vmem:[%s1 + $0x3c] sm:$0xf]
      %v233 = vld [vmem:[%s1 + $0x40] sm:$0xf]
      %v234 = vld [vmem:[%s1 + $0x44] sm:$0xf]
      %v235 = vld [vmem:[%s1 + $0x48] sm:$0xf]
      %v236 = vld [vmem:[%s1 + $0x4c] sm:$0xf]
      %v237 = vld [vmem:[%s1 + $0x50] sm:$0xf]
      %v238 = vld [vmem:[%s1 + $0x54] sm:$0xf]
      %v239 = vld [vmem:[%s1 + $0x58] sm:$0xf]
      %v240 = vld [vmem:[%s1 + $0x5c] sm:$0xf]
      %v241 = vld [vmem:[%s1 + $0x60] sm:$0xf]
      %v242 = vld [vmem:[%s1 + $0x64] sm:$0xf]
      %v243 = vld [vmem:[%s1 + $0x68] sm:$0xf]
      %v244 = vld [vmem:[%s1 + $0x6c] sm:$0xf]
      %v245 = vld [vmem:[%s1 + $0x70] sm:$0xf]
      %v246 = vld [vmem:[%s1 + $0x74] sm:$0xf]
      %v247 = vld [vmem:[%s1 + $0x78] sm:$0xf]
      %v248 = vld [vmem:[%s1 + $0x7c] sm:$0xf]
      %v249 = vld [vmem:[%s1 + $0x80] sm:$0xf]
      %v250 = vld [vmem:[%s1 + $0x84] sm:$0xf]
      %v251 = vld [vmem:[%s1 + $0x88] sm:$0xf]
      %v252 = vld [vmem:[%s1 + $0x8c] sm:$0xf]
      %v257 = vunpack.c.l.b16 %v213
      %v258 = vunpack.c.h.b16 %v213
      %v259 = vunpack.c.l.b16 %v214
      %v260 = vunpack.c.l.b16 %v215
      %v261 = vunpack.c.h.b16 %v215
      %v262 = vunpack.c.l.b16 %v216
      %v263 = vpack.c.b16 %v260, %v257
      %v264 = vpack.c.b16 %v261, %v258
      %v265 = vpack.c.b16 %v262, %v259
      %v304 = vunpack.c.l.b16 %v217
      %v305 = vunpack.c.l.b16 %v218
      %v306 = vunpack.c.l.b16 %v219
      %v307 = vunpack.c.l.b16 %v220
      %v308 = vunpack.c.l.b16 %v221
      %v309 = vunpack.c.l.b16 %v222
      %v310 = vunpack.c.l.b16 %v223
      %v311 = vunpack.c.l.b16 %v224
      %v312 = vunpack.c.l.b16 %v225
      %v313 = vunpack.c.l.b16 %v226
      %v314 = vunpack.c.l.b16 %v227
      %v315 = vunpack.c.l.b16 %v228
      %v316 = vunpack.c.l.b16 %v229
      %v317 = vunpack.c.l.b16 %v230
      %v318 = vunpack.c.l.b16 %v231
      %v319 = vunpack.c.l.b16 %v232
      %v320 = vunpack.c.l.b16 %v233
      %v321 = vunpack.c.l.b16 %v234
      %v322 = vunpack.c.l.b16 %v235
      %v323 = vunpack.c.l.b16 %v236
      %v324 = vunpack.c.l.b16 %v237
      %v325 = vunpack.c.l.b16 %v238
      %v326 = vunpack.c.l.b16 %v239
      %v327 = vunpack.c.l.b16 %v240
      %v328 = vunpack.c.l.b16 %v241
      %v329 = vunpack.c.l.b16 %v242
      %v330 = vunpack.c.l.b16 %v243
      %v331 = vunpack.c.l.b16 %v244
      %v332 = vunpack.c.l.b16 %v245
      %v333 = vunpack.c.l.b16 %v246
      %v334 = vunpack.c.l.b16 %v247
      %v335 = vunpack.c.l.b16 %v248
      %v336 = vunpack.c.l.b16 %v249
      %v337 = vunpack.c.l.b16 %v250
      %v338 = vunpack.c.l.b16 %v251
      %v339 = vunpack.c.l.b16 %v252
      %v340 = vpack.c.b16 %v305, %v304
      %v341 = vpack.c.b16 %v307, %v306
      %v342 = vpack.c.b16 %v309, %v308
      %v343 = vpack.c.b16 %v311, %v310
      %v344 = vpack.c.b16 %v313, %v312
      %v345 = vpack.c.b16 %v315, %v314
      %v346 = vpack.c.b16 %v317, %v316
      %v347 = vpack.c.b16 %v319, %v318
      %v348 = vpack.c.b16 %v321, %v320
      %v349 = vpack.c.b16 %v323, %v322
      %v350 = vpack.c.b16 %v325, %v324
      %v351 = vpack.c.b16 %v327, %v326
      %v352 = vpack.c.b16 %v329, %v328
      %v353 = vpack.c.b16 %v331, %v330
      %v354 = vpack.c.b16 %v333, %v332
      %v355 = vpack.c.b16 %v335, %v334
      %v356 = vpack.c.b16 %v337, %v336
      %v357 = vpack.c.b16 %v339, %v338
      %vm376 = vcmask 261120
      %v378 = vsel %vm376, %v265, 0
      %380 = vmatprep.subr.bf16.mxu0 0
      %381 = vmatpush1.bf16.msra.mxu0 %v340
      %382 = vmatprep.subr.bf16.mxu0 0
      %383 = vmatpush1.bf16.msra.mxu0 %v341
      %384 = vmatprep.subr.bf16.mxu0 0
      %385 = vmatpush1.bf16.msra.mxu0 %v342
      %386 = vmatprep.subr.bf16.mxu0 0
      %387 = vmatpush1.bf16.msra.mxu0 %v343
      %388 = vmatprep.subr.bf16.mxu0 0
      %389 = vmatpush1.bf16.msra.mxu0 %v344
      %390 = vmatprep.subr.bf16.mxu0 0
      %391 = vmatpush1.bf16.msra.mxu0 %v345
      %392 = vmatprep.subr.bf16.mxu0 0
      %393 = vmatpush1.bf16.msra.mxu0 %v346
      %394 = vmatprep.subr.bf16.mxu0 0
      %395 = vmatpush1.bf16.msra.mxu0 %v347
      %396 = vmatprep.subr.bf16.mxu0 0
      %397 = vmatpush1.bf16.msra.mxu0 %v348
      %398 = vmatprep.subr.bf16.mxu0 0
      %399 = vmatpush1.bf16.msra.mxu0 %v349
      %400 = vmatprep.subr.bf16.mxu0 0
      %401 = vmatpush1.bf16.msra.mxu0 %v350
      %402 = vmatprep.subr.bf16.mxu0 0
      %403 = vmatpush1.bf16.msra.mxu0 %v351
      %404 = vmatprep.subr.bf16.mxu0 0
      %405 = vmatpush1.bf16.msra.mxu0 %v352
      %406 = vmatprep.subr.bf16.mxu0 0
      %407 = vmatpush1.bf16.msra.mxu0 %v353
      %408 = vmatprep.subr.bf16.mxu0 0
      %409 = vmatpush1.bf16.msra.mxu0 %v354
      %410 = vmatprep.subr.bf16.mxu0 0
      %411 = vmatpush1.bf16.msra.mxu0 %v355
      %412 = vmatprep.mubr.bf16.mxu0 %v264
      %413 = vmatmul.mubr.bf16.gmra.mrb[0].mxu0 %v263
      %v414 = vpop.f32.mrb[0].mxu0
      %v415 = vadd.f32 0.0, %v414
      %v416 = vpop.f32.mrb[0].mxu0
      %v417 = vpop.f32.mrb[0].mxu0
      %v418 = vadd.f32 0.0, %v417
      %v419 = vpop.f32.mrb[0].mxu0
      %420 = vdwg.mxu0
      %421 = vmatprep.subr.bf16.mxu0 0
      %422 = vmatpush1.bf16.msra.mxu0 %v356
      %423 = vmatprep.subr.bf16.mxu0 0
      %424 = vmatpush1.bf16.msra.mxu0 %v357
      %425 = vmatprep.subr.bf16.mxu0 0
      %426 = vmatpush1.bf16.msra.mxu0 0
      %427 = vmatprep.subr.bf16.mxu0 0
      %428 = vmatpush1.bf16.msra.mxu0 0
      %429 = vmatprep.subr.bf16.mxu0 0
      %430 = vmatpush1.bf16.msra.mxu0 0
      %431 = vmatprep.subr.bf16.mxu0 0
      %432 = vmatpush1.bf16.msra.mxu0 0
      %433 = vmatprep.subr.bf16.mxu0 0
      %434 = vmatpush1.bf16.msra.mxu0 0
      %435 = vmatprep.subr.bf16.mxu0 0
      %436 = vmatpush1.bf16.msra.mxu0 0
      %437 = vmatprep.subr.bf16.mxu0 0
      %438 = vmatpush1.bf16.msra.mxu0 0
      %439 = vmatprep.subr.bf16.mxu0 0
      %440 = vmatpush1.bf16.msra.mxu0 0
      %441 = vmatprep.subr.bf16.mxu0 0
      %442 = vmatpush1.bf16.msra.mxu0 0
      %443 = vmatprep.subr.bf16.mxu0 0
      %444 = vmatpush1.bf16.msra.mxu0 0
      %445 = vmatprep.subr.bf16.mxu0 0
      %446 = vmatpush1.bf16.msra.mxu0 0
      %447 = vmatprep.subr.bf16.mxu0 0
      %448 = vmatpush1.bf16.msra.mxu0 0
      %449 = vmatprep.subr.bf16.mxu0 0
      %450 = vmatpush1.bf16.msra.mxu0 0
      %451 = vmatprep.subr.bf16.mxu0 0
      %452 = vmatpush1.bf16.msra.mxu0 0
      %453 = vmatprep.mubr.bf16.mxu0 0
      %454 = vmatmul.mubr.bf16.gmra.mrb[0].mxu0 %v378
      %v455 = vpop.f32.mrb[0].mxu0
      %v456 = vadd.f32 %v415, %v455
      %v457 = vpop.f32.mrb[0].mxu0
      %v458 = vpop.f32.mrb[0].mxu0
      %v459 = vadd.f32 %v418, %v458
      %v460 = vpop.f32.mrb[0].mxu0
      %461 = vdwg.mxu0
      %v462 = vld [vmem:[%s206] sm:$0x1]
      %v464 = vlaneseq
      %v465 = vshrl.u32 %v464, 7
      %v466 = vsub.s32 0, %v465
      %v467 = vrot.slane %v462, %v466
      %v469 = vmul.f32 %v456, %v467
      %v470 = vmul.f32 %v459, %v467
      %v471 = vld [vmem:[%s3] sm:$0x1]
      %v473 = vlaneseq
      %v474 = vshrl.u32 %v473, 7
      %v475 = vsub.s32 0, %v474
      %v476 = vrot.slane %v471, %v475
      %v478 = vadd.f32 %v469, %v476
      %v479 = vadd.f32 %v470, %v476
      %vm480 = vcmp.ge.f32.partialorder %v478, 0.0
      %vm481 = vcmp.ge.f32.partialorder %v479, 0.0
      %v482 = vmul.f32 %v478, 0.2
      %v483 = vmul.f32 %v479, 0.2
      %v484 = vsel %vm480, %v478, %v482
      %v485 = vsel %vm481, %v479, %v483
      %v486 = vmul.f32 %v484, 1.4142135
      %v487 = vmul.f32 %v485, 1.4142135
      %488 = vst [vmem:[%s211] sm:$0xff] %v486
      %489 = vst [vmem:[%s211 + $0x8] sm:$0xff] %v487
      %p490 = scmp.lt.s32.totalorder %s15, 1
      %s491 = scalar_select %p490, %s15, 1
      %s492 = smul.addr %s491, 2
      %s493 = smul.addr %s492, 8
      %s494 = scalar_lea.vmem %s4, %s493
      // Predicated region
      $region37: #{_lambda_.2} parent=35 // pred_check
        %p495 = pneg %p127
      $region38: #{_lambda_.2} parent=35 // pred_check_branch
        %497 = sbr.rel (%p495) target = $region40
      $region39: #{_lambda_.2} parent=35 // pred_region
        _
      $region40: #{_lambda_.2} parent=35 // pred_fallthru
        _
    $region36: #{_lambda_.2} parent=5 // pred_fallthru
      _
    %p498 = scmp.le.s32.totalorder 2, %s10
    // Predicated region
    $region41: #{_lambda_.2} parent=5 // pred_check
      %p499 = pneg %p498
    $region42: #{_lambda_.2} parent=5 // pred_check_branch
      %501 = sbr.rel (%p499) target = $region44
    $region43: #{_lambda_.2} parent=5 // pred_region
      %s502 = ssub.s32 %s10, 2
      // Predicated region
      $region45: #{_lambda_.2} parent=43 // pred_check
        %p503 = pneg %p133
      $region46: #{_lambda_.2} parent=43 // pred_check_branch
        %505 = sbr.rel (%p503) target = $region48
      $region47: #{_lambda_.2} parent=43 // pred_region
        %p506 = scmp.lt.s32.totalorder %s16, 1
        %s507 = scalar_select %p506, %s16, 1
        %s508 = smul.addr %s507, 2
        %s509 = smul.addr %s508, 8
        %s510 = scalar_lea.vmem %s4, %s509
      $region48: #{_lambda_.2} parent=43 // pred_fallthru
        _
    $region44: #{_lambda_.2} parent=5 // pred_fallthru
      _
  $region6: #{_lambda_.2} parent=0 // loop_footer
    %s14 = sadd.s32 1, %s10
  $region7: #{_lambda_.2} parent=0 // loop_footer_branch
    %9 = sbr.rel target = $region3
  $region8: #{_lambda_.2} parent=0 // loop_exit
    _

// kernel: _lambda_.3
$region0: #{_lambda_.3}
  #allocation0 [shape = 'u32[]', space=smem, size = 0x4, offset = 0x4, fixed_abs, tag = 'smem constant byte address 0x4 - core index']
  #allocation1 [shape = 'u32[144,128]{1,0:T(1,128)}', space=vmem, size = 0x12000, scoped, tag = 'internal scratch']
  %s0 = inlined_call_operand.vmem [shape: bf16[2,64,288], index: 0, kind: input, shape index: {}]
  %s1 = inlined_call_operand.vmem [shape: bf16[288,128], index: 1, kind: input, shape index: {}]
  %s2 = inlined_call_operand.vmem [shape: f32[2,1,128], index: 2, kind: input, shape index: {}]
  %s3 = inlined_call_operand.vmem [shape: f32[1,128], index: 3, kind: input, shape index: {}]
  %s4 = inlined_call_operand.vmem [shape: f32[2,1,128], index: 4, kind: input, shape index: {}]
  %s5 = inlined_call_operand.vmem [shape: bf16[128,128], index: 5, kind: input, shape index: {}]
  %s6 = inlined_call_operand.vmem [shape: f32[1,128], index: 6, kind: input, shape index: {}]
  %s7 = inlined_call_operand.vmem [shape: f32[2,64,128], index: 7, kind: output, shape index: {0}]
  %s8 = inlined_call_operand.vmem [shape: f32[2,64,128], index: 8, kind: output, shape index: {1}]
  %9 = xla_tuple %s7, %s8
  %s10 = sld [smem:[#allocation0]]
  $region69: #{_lambda_.3} parent=0
    _
  %s12 = ssub.s32 1, %s10
  %s13 = scalar_select 0, %s12, %s10
  loop: start=0, step=1, limit=4
  $region2: #{_lambda_.3} parent=0 // loop_pre_header
    _
  $region3: #{_lambda_.3} parent=0 // loop_header
    %s15 = sphi 0, %s19
    %p16 = scmp.ge.s32.totalorder %s15, 4
    %s25 = sphi 0, %s27
    %s28 = sphi 0, %s25
    %s29 = sphi 0, %s28
    %s45 = sphi 0, %s29
    %s49 = sphi 0, %s49
    %s51 = sphi 0, %s49
    %s52 = sphi 0, %s51
    %s66 = sphi 0, %s52
    %s72 = sphi 0, %s74
    %s75 = sphi 0, %s72
    %s76 = sphi 0, %s75
    %s92 = sphi 0, %s76
    %s96 = sphi 0, %s96
    %s98 = sphi 0, %s96
    %s99 = sphi 0, %s98
    %s113 = sphi 0, %s99
    %s119 = sphi 0, %s121
    %s122 = sphi 0, %s119
    %s123 = sphi 0, %s122
    %s139 = sphi 0, %s123
    %s143 = sphi 0, %s143
    %s145 = sphi 0, %s143
    %s146 = sphi 0, %s145
    %s160 = sphi 0, %s146
    %s164 = sphi 0, %s164
    %s166 = sphi 0, %s164
    %s167 = sphi 0, %s166
    %s181 = sphi 0, %s167
    %s187 = sphi 0, %s189
    %s190 = sphi 0, %s187
    %s191 = sphi 0, %s190
    %s207 = sphi 0, %s191
    %s213 = sphi 0, %s215
    %s216 = sphi 0, %s213
    %s217 = sphi 0, %s216
    %s233 = sphi 0, %s217
  $region4: #{_lambda_.3} parent=0 // loop_header_branch
    %18 = sbr.rel (%p16) target = $region8
  $region5: #{_lambda_.3} parent=0 // loop_body
    %s20 = ssub.s32 %s15, 1
    %s21 = ssub.s32 %s15, 2
    %s22 = sadd.s32 %s15, 1
    %s23 = ssub.s32 %s15, %s22
    %p24 = scmp.eq.s32.totalorder %s23, 0
    %s26 = sadd.s32 %s25, 1
    %s27 = scalar_select %p24, %s25, %s26
    %p30 = pneg %p24
    %p31 = scmp.eq.s32.totalorder %s15, 1
    %p32 = por %p30, %p31
    %p33 = scmp.ne.s32.totalorder %s25, %s28
    %p34 = scmp.eq.s32.totalorder %s15, 0
    %p35 = por %p33, %p34
    %p36 = scmp.ne.s32.totalorder %s25, %s28
    %p37 = scmp.eq.s32.totalorder %s20, 1
    %p38 = por %p36, %p37
    %p39 = scmp.ne.s32.totalorder %s28, %s29
    %p40 = scmp.eq.s32.totalorder %s20, 0
    %p41 = por %p39, %p40
    %p42 = scmp.ne.s32.totalorder %s28, %s29
    %p43 = scmp.eq.s32.totalorder %s21, 1
    %p44 = por %p42, %p43
    %p46 = scmp.ne.s32.totalorder %s29, %s45
    %p47 = scmp.eq.s32.totalorder %s21, 0
    %p48 = por %p46, %p47
    %s50 = sadd.s32 %s49, 1
    %p53 = scmp.eq.s32.totalorder %s15, 1
    %p54 = scmp.ne.s32.totalorder %s49, %s51
    %p55 = scmp.eq.s32.totalorder %s15, 0
    %p56 = por %p54, %p55
    %p57 = scmp.ne.s32.totalorder %s49, %s51
    %p58 = scmp.eq.s32.totalorder %s20, 1
    %p59 = por %p57, %p58
    %p60 = scmp.ne.s32.totalorder %s51, %s52
    %p61 = scmp.eq.s32.totalorder %s20, 0
    %p62 = por %p60, %p61
    %p63 = scmp.ne.s32.totalorder %s51, %s52
    %p64 = scmp.eq.s32.totalorder %s21, 1
    %p65 = por %p63, %p64
    %p67 = scmp.ne.s32.totalorder %s52, %s66
    %p68 = scmp.eq.s32.totalorder %s21, 0
    %p69 = por %p67, %p68
    %s70 = ssub.s32 %s15, %s22
    %p71 = scmp.eq.s32.totalorder %s70, 0
    %s73 = sadd.s32 %s72, 1
    %s74 = scalar_select %p71, %s72, %s73
    %p77 = pneg %p71
    %p78 = scmp.eq.s32.totalorder %s15, 1
    %p79 = por %p77, %p78
    %p80 = scmp.ne.s32.totalorder %s72, %s75
    %p81 = scmp.eq.s32.totalorder %s15, 0
    %p82 = por %p80, %p81
    %p83 = scmp.ne.s32.totalorder %s72, %s75
    %p84 = scmp.eq.s32.totalorder %s20, 1
    %p85 = por %p83, %p84
    %p86 = scmp.ne.s32.totalorder %s75, %s76
    %p87 = scmp.eq.s32.totalorder %s20, 0
    %p88 = por %p86, %p87
    %p89 = scmp.ne.s32.totalorder %s75, %s76
    %p90 = scmp.eq.s32.totalorder %s21, 1
    %p91 = por %p89, %p90
    %p93 = scmp.ne.s32.totalorder %s76, %s92
    %p94 = scmp.eq.s32.totalorder %s21, 0
    %p95 = por %p93, %p94
    %s97 = sadd.s32 %s96, 1
    %p100 = scmp.eq.s32.totalorder %s15, 1
    %p101 = scmp.ne.s32.totalorder %s96, %s98
    %p102 = scmp.eq.s32.totalorder %s15, 0
    %p103 = por %p101, %p102
    %p104 = scmp.ne.s32.totalorder %s96, %s98
    %p105 = scmp.eq.s32.totalorder %s20, 1
    %p106 = por %p104, %p105
    %p107 = scmp.ne.s32.totalorder %s98, %s99
    %p108 = scmp.eq.s32.totalorder %s20, 0
    %p109 = por %p107, %p108
    %p110 = scmp.ne.s32.totalorder %s98, %s99
    %p111 = scmp.eq.s32.totalorder %s21, 1
    %p112 = por %p110, %p111
    %p114 = scmp.ne.s32.totalorder %s99, %s113
    %p115 = scmp.eq.s32.totalorder %s21, 0
    %p116 = por %p114, %p115
    %s117 = ssub.s32 %s15, %s22
    %p118 = scmp.eq.s32.totalorder %s117, 0
    %s120 = sadd.s32 %s119, 1
    %s121 = scalar_select %p118, %s119, %s120
    %p124 = pneg %p118
    %p125 = scmp.eq.s32.totalorder %s15, 1
    %p126 = por %p124, %p125
    %p127 = scmp.ne.s32.totalorder %s119, %s122
    %p128 = scmp.eq.s32.totalorder %s15, 0
    %p129 = por %p127, %p128
    %p130 = scmp.ne.s32.totalorder %s119, %s122
    %p131 = scmp.eq.s32.totalorder %s20, 1
    %p132 = por %p130, %p131
    %p133 = scmp.ne.s32.totalorder %s122, %s123
    %p134 = scmp.eq.s32.totalorder %s20, 0
    %p135 = por %p133, %p134
    %p136 = scmp.ne.s32.totalorder %s122, %s123
    %p137 = scmp.eq.s32.totalorder %s21, 1
    %p138 = por %p136, %p137
    %p140 = scmp.ne.s32.totalorder %s123, %s139
    %p141 = scmp.eq.s32.totalorder %s21, 0
    %p142 = por %p140, %p141
    %s144 = sadd.s32 %s143, 1
    %p147 = scmp.eq.s32.totalorder %s15, 1
    %p148 = scmp.ne.s32.totalorder %s143, %s145
    %p149 = scmp.eq.s32.totalorder %s15, 0
    %p150 = por %p148, %p149
    %p151 = scmp.ne.s32.totalorder %s143, %s145
    %p152 = scmp.eq.s32.totalorder %s20, 1
    %p153 = por %p151, %p152
    %p154 = scmp.ne.s32.totalorder %s145, %s146
    %p155 = scmp.eq.s32.totalorder %s20, 0
    %p156 = por %p154, %p155
    %p157 = scmp.ne.s32.totalorder %s145, %s146
    %p158 = scmp.eq.s32.totalorder %s21, 1
    %p159 = por %p157, %p158
    %p161 = scmp.ne.s32.totalorder %s146, %s160
    %p162 = scmp.eq.s32.totalorder %s21, 0
    %p163 = por %p161, %p162
    %s165 = sadd.s32 %s164, 1
    %p168 = scmp.eq.s32.totalorder %s15, 1
    %p169 = scmp.ne.s32.totalorder %s164, %s166
    %p170 = scmp.eq.s32.totalorder %s15, 0
    %p171 = por %p169, %p170
    %p172 = scmp.ne.s32.totalorder %s164, %s166
    %p173 = scmp.eq.s32.totalorder %s20, 1
    %p174 = por %p172, %p173
    %p175 = scmp.ne.s32.totalorder %s166, %s167
    %p176 = scmp.eq.s32.totalorder %s20, 0
    %p177 = por %p175, %p176
    %p178 = scmp.ne.s32.totalorder %s166, %s167
    %p179 = scmp.eq.s32.totalorder %s21, 1
    %p180 = por %p178, %p179
    %p182 = scmp.ne.s32.totalorder %s167, %s181
    %p183 = scmp.eq.s32.totalorder %s21, 0
    %p184 = por %p182, %p183
    %s185 = ssub.s32 %s15, %s22
    %p186 = scmp.eq.s32.totalorder %s185, 0
    %s188 = sadd.s32 %s187, 1
    %s189 = scalar_select %p186, %s187, %s188
    %p192 = pneg %p186
    %p193 = scmp.eq.s32.totalorder %s15, 1
    %p194 = por %p192, %p193
    %p195 = scmp.ne.s32.totalorder %s187, %s190
    %p196 = scmp.eq.s32.totalorder %s15, 0
    %p197 = por %p195, %p196
    %p198 = scmp.ne.s32.totalorder %s187, %s190
    %p199 = scmp.eq.s32.totalorder %s20, 1
    %p200 = por %p198, %p199
    %p201 = scmp.ne.s32.totalorder %s190, %s191
    %p202 = scmp.eq.s32.totalorder %s20, 0
    %p203 = por %p201, %p202
    %p204 = scmp.ne.s32.totalorder %s190, %s191
    %p205 = scmp.eq.s32.totalorder %s21, 1
    %p206 = por %p204, %p205
    %p208 = scmp.ne.s32.totalorder %s191, %s207
    %p209 = scmp.eq.s32.totalorder %s21, 0
    %p210 = por %p208, %p209
    %s211 = ssub.s32 %s15, %s22
    %p212 = scmp.eq.s32.totalorder %s211, 0
    %s214 = sadd.s32 %s213, 1
    %s215 = scalar_select %p212, %s213, %s214
    %p218 = pneg %p212
    %p219 = scmp.eq.s32.totalorder %s15, 1
    %p220 = por %p218, %p219
    %p221 = scmp.ne.s32.totalorder %s213, %s216
    %p222 = scmp.eq.s32.totalorder %s15, 0
    %p223 = por %p221, %p222
    %p224 = scmp.ne.s32.totalorder %s213, %s216
    %p225 = scmp.eq.s32.totalorder %s20, 1
    %p226 = por %p224, %p225
    %p227 = scmp.ne.s32.totalorder %s216, %s217
    %p228 = scmp.eq.s32.totalorder %s20, 0
    %p229 = por %p227, %p228
    %p230 = scmp.ne.s32.totalorder %s216, %s217
    %p231 = scmp.eq.s32.totalorder %s21, 1
    %p232 = por %p230, %p231
    %p234 = scmp.ne.s32.totalorder %s217, %s233
    %p235 = scmp.eq.s32.totalorder %s21, 0
    %p236 = por %p234, %p235
    %p237 = scmp.le.s32.totalorder 1, %s15
    %p238 = scmp.lt.s32.totalorder %s15, 3
    %p239 = pnand %p237, %p238
    %p240 = pneg %p239
    // Predicated region
    $region9: #{_lambda_.3} parent=5 // pred_check
      _
    $region10: #{_lambda_.3} parent=5 // pred_check_branch
      %242 = sbr.rel (%p239) target = $region12
    $region11: #{_lambda_.3} parent=5 // pred_region
      %s243 = ssub.s32 %s15, 1
      // Predicated region
      $region13: #{_lambda_.3} parent=11 // pred_check
        %p244 = pneg %p62
      $region14: #{_lambda_.3} parent=11 // pred_check_branch
        %246 = sbr.rel (%p244) target = $region16
      $region15: #{_lambda_.3} parent=11 // pred_region
        _
      $region16: #{_lambda_.3} parent=11 // pred_fallthru
        _
      // Predicated region
      $region17: #{_lambda_.3} parent=11 // pred_check
        %p247 = pneg %p109
      $region18: #{_lambda_.3} parent=11 // pred_check_branch
        %249 = sbr.rel (%p247) target = $region20
      $region19: #{_lambda_.3} parent=11 // pred_region
        _
      $region20: #{_lambda_.3} parent=11 // pred_fallthru
        _
      // Predicated region
      $region21: #{_lambda_.3} parent=11 // pred_check
        %p250 = pneg %p156
      $region22: #{_lambda_.3} parent=11 // pred_check_branch
        %252 = sbr.rel (%p250) target = $region24
      $region23: #{_lambda_.3} parent=11 // pred_region
        _
      $region24: #{_lambda_.3} parent=11 // pred_fallthru
        _
      // Predicated region
      $region25: #{_lambda_.3} parent=11 // pred_check
        %p253 = pneg %p177
      $region26: #{_lambda_.3} parent=11 // pred_check_branch
        %255 = sbr.rel (%p253) target = $region28
      $region27: #{_lambda_.3} parent=11 // pred_region
        _
      $region28: #{_lambda_.3} parent=11 // pred_fallthru
        _
    $region12: #{_lambda_.3} parent=5 // pred_fallthru
      _
    %p256 = scmp.lt.s32.totalorder %s15, 2
    // Predicated region
    $region29: #{_lambda_.3} parent=5 // pred_check
      %p257 = pneg %p256
    $region30: #{_lambda_.3} parent=5 // pred_check_branch
      %259 = sbr.rel (%p257) target = $region32
    $region31: #{_lambda_.3} parent=5 // pred_region
      // Predicated region
      $region33: #{_lambda_.3} parent=31 // pred_check
        %p260 = pneg %p35
      $region34: #{_lambda_.3} parent=31 // pred_check_branch
        %262 = sbr.rel (%p260) target = $region36
      $region35: #{_lambda_.3} parent=31 // pred_region
        %p263 = scmp.lt.s32.totalorder %s15, 1
        %s264 = scalar_select %p263, %s15, 1
        %s265 = smul.addr %s264, 24
        %s266 = smul.addr %s265, 4
        %s267 = scalar_lea.vmem %s0, %s266
      $region36: #{_lambda_.3} parent=31 // pred_fallthru
        _
      // Predicated region
      $region37: #{_lambda_.3} parent=31 // pred_check
        %p268 = pneg %p82
      $region38: #{_lambda_.3} parent=31 // pred_check_branch
        %270 = sbr.rel (%p268) target = $region40
      $region39: #{_lambda_.3} parent=31 // pred_region
        %p271 = scmp.lt.s32.totalorder %s15, 1
        %s272 = scalar_select %p271, %s15, 1
        %s273 = scalar_lea.vmem %s2, %s272
      $region40: #{_lambda_.3} parent=31 // pred_fallthru
        _
      // Predicated region
      $region41: #{_lambda_.3} parent=31 // pred_check
        %p274 = pneg %p129
      $region42: #{_lambda_.3} parent=31 // pred_check_branch
        %276 = sbr.rel (%p274) target = $region44
      $region43: #{_lambda_.3} parent=31 // pred_region
        %p277 = scmp.lt.s32.totalorder %s15, 1
        %s278 = scalar_select %p277, %s15, 1
        %s279 = scalar_lea.vmem %s4, %s278
      $region44: #{_lambda_.3} parent=31 // pred_fallthru
        _
    $region32: #{_lambda_.3} parent=5 // pred_fallthru
      _
    %p280 = scmp.le.s32.totalorder 1, %s15
    %p281 = scmp.lt.s32.totalorder %s15, 3
    %p282 = pnand %p280, %p281
    %p283 = pneg %p282
    // Predicated region
    $region45: #{_lambda_.3} parent=5 // pred_check
      _
    $region46: #{_lambda_.3} parent=5 // pred_check_branch
      %285 = sbr.rel (%p282) target = $region48
    $region47: #{_lambda_.3} parent=5 // pred_region
      %s286 = ssub.s32 %s15, 1
      %p287 = scmp.lt.s32.totalorder %s20, 1
      %s288 = scalar_select %p287, %s20, 1
      %s289 = smul.addr %s288, 24
      %s290 = smul.addr %s289, 4
      %s291 = scalar_lea.vmem %s0, %s290
      %p292 = pneg %p41
      %p293 = pneg %p38
      %p294 = pneg %p62
      %p295 = pneg %p59
      %p296 = scmp.lt.s32.totalorder %s20, 1
      %s297 = scalar_select %p296, %s20, 1
      %s298 = scalar_lea.vmem %s2, %s297
      %p299 = pneg %p88
      %p300 = pneg %p85
      %p301 = pneg %p109
      %p302 = pneg %p106
      %p303 = scmp.lt.s32.totalorder %s20, 1
      %s304 = scalar_select %p303, %s20, 1
      %s305 = scalar_lea.vmem %s4, %s304
      %p306 = pneg %p135
      %p307 = pneg %p132
      %p308 = pneg %p156
      %p309 = pneg %p153
      %p310 = pneg %p177
      %p311 = pneg %p174
      %p312 = pneg %p203
      %p313 = pneg %p200
      %p314 = scmp.lt.s32.totalorder %s20, 1
      %s315 = scalar_select %p314, %s20, 1
      %s316 = smul.addr %s315, 8
      %s317 = smul.addr %s316, 8
      %s318 = scalar_lea.vmem %s7, %s317
      %p319 = pneg %p229
      %p320 = pneg %p226
      %p321 = scmp.lt.s32.totalorder %s20, 1
      %s322 = scalar_select %p321, %s20, 1
      %s323 = smul.addr %s322, 8
      %s324 = smul.addr %s323, 8
      %s325 = scalar_lea.vmem %s8, %s324
      %p326 = scmp.lt.s32.totalorder %s20, 1
      %s327 = scalar_select %p326, %s20, 1
      %s328 = smul.addr %s327, 24
      %s329 = smul.addr %s328, 4
      %s330 = scalar_lea.vmem %s0, %s329
      %p331 = scmp.lt.s32.totalorder %s20, 1
      %s332 = scalar_select %p331, %s20, 1
      %s333 = scalar_lea.vmem %s2, %s332
      %p334 = scmp.lt.s32.totalorder %s20, 1
      %s335 = scalar_select %p334, %s20, 1
      %s336 = scalar_lea.vmem %s4, %s335
      %p337 = scmp.lt.s32.totalorder %s20, 1
      %s338 = scalar_select %p337, %s20, 1
      %s339 = smul.addr %s338, 8
      %s340 = smul.addr %s339, 8
      %s341 = scalar_lea.vmem %s7, %s340
      %p342 = scmp.lt.s32.totalorder %s20, 1
      %s343 = scalar_select %p342, %s20, 1
      %s344 = smul.addr %s343, 8
      %s345 = smul.addr %s344, 8
      %s346 = scalar_lea.vmem %s8, %s345
      %v348 = vld [vmem:[%s330] sm:$0xff]
      %v349 = vld [vmem:[%s330 + $0x8] sm:$0xf]
      %v350 = vld [vmem:[%s330 + $0xc] sm:$0xff]
      %v351 = vld [vmem:[%s330 + $0x14] sm:$0xf]
      %v352 = vld [vmem:[%s330 + $0x18] sm:$0xff]
      %v353 = vld [vmem:[%s330 + $0x20] sm:$0xf]
      %v354 = vld [vmem:[%s330 + $0x24] sm:$0xff]
      %v355 = vld [vmem:[%s330 + $0x2c] sm:$0xf]
      %v356 = vld [vmem:[%s330 + $0x30] sm:$0xff]
      %v357 = vld [vmem:[%s330 + $0x38] sm:$0xf]
      %v358 = vld [vmem:[%s330 + $0x3c] sm:$0xff]
      %v359 = vld [vmem:[%s330 + $0x44] sm:$0xf]
      %v360 = vld [vmem:[%s330 + $0x48] sm:$0xff]
      %v361 = vld [vmem:[%s330 + $0x50] sm:$0xf]
      %v362 = vld [vmem:[%s330 + $0x54] sm:$0xff]
      %v363 = vld [vmem:[%s330 + $0x5c] sm:$0xf]
      %v364 = vld [vmem:[%s1] sm:$0xf]
      %v365 = vld [vmem:[%s1 + $0x4] sm:$0xf]
      %v366 = vld [vmem:[%s1 + $0x8] sm:$0xf]
      %v367 = vld [vmem:[%s1 + $0xc] sm:$0xf]
      %v368 = vld [vmem:[%s1 + $0x10] sm:$0xf]
      %v369 = vld [vmem:[%s1 + $0x14] sm:$0xf]
      %v370 = vld [vmem:[%s1 + $0x18] sm:$0xf]
      %v371 = vld [vmem:[%s1 + $0x1c] sm:$0xf]
      %v372 = vld [vmem:[%s1 + $0x20] sm:$0xf]
      %v373 = vld [vmem:[%s1 + $0x24] sm:$0xf]
      %v374 = vld [vmem:[%s1 + $0x28] sm:$0xf]
      %v375 = vld [vmem:[%s1 + $0x2c] sm:$0xf]
      %v376 = vld [vmem:[%s1 + $0x30] sm:$0xf]
      %v377 = vld [vmem:[%s1 + $0x34] sm:$0xf]
      %v378 = vld [vmem:[%s1 + $0x38] sm:$0xf]
      %v379 = vld [vmem:[%s1 + $0x3c] sm:$0xf]
      %v380 = vld [vmem:[%s1 + $0x40] sm:$0xf]
      %v381 = vld [vmem:[%s1 + $0x44] sm:$0xf]
      %v382 = vld [vmem:[%s1 + $0x48] sm:$0xf]
      %v383 = vld [vmem:[%s1 + $0x4c] sm:$0xf]
      %v384 = vld [vmem:[%s1 + $0x50] sm:$0xf]
      %v385 = vld [vmem:[%s1 + $0x54] sm:$0xf]
      %v386 = vld [vmem:[%s1 + $0x58] sm:$0xf]
      %v387 = vld [vmem:[%s1 + $0x5c] sm:$0xf]
      %v388 = vld [vmem:[%s1 + $0x60] sm:$0xf]
      %v389 = vld [vmem:[%s1 + $0x64] sm:$0xf]
      %v390 = vld [vmem:[%s1 + $0x68] sm:$0xf]
      %v391 = vld [vmem:[%s1 + $0x6c] sm:$0xf]
      %v392 = vld [vmem:[%s1 + $0x70] sm:$0xf]
      %v393 = vld [vmem:[%s1 + $0x74] sm:$0xf]
      %v394 = vld [vmem:[%s1 + $0x78] sm:$0xf]
      %v395 = vld [vmem:[%s1 + $0x7c] sm:$0xf]
      %v396 = vld [vmem:[%s1 + $0x80] sm:$0xf]
      %v397 = vld [vmem:[%s1 + $0x84] sm:$0xf]
      %v398 = vld [vmem:[%s1 + $0x88] sm:$0xf]
      %v399 = vld [vmem:[%s1 + $0x8c] sm:$0xf]
      %v416 = vunpack.c.l.b16 %v348
      %v417 = vunpack.c.h.b16 %v348
      %v418 = vunpack.c.l.b16 %v349
      %v419 = vunpack.c.l.b16 %v350
      %v420 = vunpack.c.h.b16 %v350
      %v421 = vunpack.c.l.b16 %v351
      %v422 = vunpack.c.l.b16 %v352
      %v423 = vunpack.c.h.b16 %v352
      %v424 = vunpack.c.l.b16 %v353
      %v425 = vunpack.c.l.b16 %v354
      %v426 = vunpack.c.h.b16 %v354
      %v427 = vunpack.c.l.b16 %v355
      %v428 = vunpack.c.l.b16 %v356
      %v429 = vunpack.c.h.b16 %v356
      %v430 = vunpack.c.l.b16 %v357
      %v431 = vunpack.c.l.b16 %v358
      %v432 = vunpack.c.h.b16 %v358
      %v433 = vunpack.c.l.b16 %v359
      %v434 = vunpack.c.l.b16 %v360
      %v435 = vunpack.c.h.b16 %v360
      %v436 = vunpack.c.l.b16 %v361
      %v437 = vunpack.c.l.b16 %v362
      %v438 = vunpack.c.h.b16 %v362
      %v439 = vunpack.c.l.b16 %v363
      %v440 = vpack.c.b16 %v419, %v416
      %v441 = vpack.c.b16 %v420, %v417
      %v442 = vpack.c.b16 %v421, %v418
      %v443 = vpack.c.b16 %v425, %v422
      %v444 = vpack.c.b16 %v426, %v423
      %v445 = vpack.c.b16 %v427, %v424
      %v446 = vpack.c.b16 %v431, %v428
      %v447 = vpack.c.b16 %v432, %v429
      %v448 = vpack.c.b16 %v433, %v430
      %v449 = vpack.c.b16 %v437, %v434
      %v450 = vpack.c.b16 %v438, %v435
      %v451 = vpack.c.b16 %v439, %v436
      %v496 = vunpack.c.l.b16 %v364
      %v497 = vunpack.c.l.b16 %v365
      %v498 = vunpack.c.l.b16 %v366
      %v499 = vunpack.c.l.b16 %v367
      %v500 = vunpack.c.l.b16 %v368
      %v501 = vunpack.c.l.b16 %v369
      %v502 = vunpack.c.l.b16 %v370
      %v503 = vunpack.c.l.b16 %v371
      %v504 = vunpack.c.l.b16 %v372
      %v505 = vunpack.c.l.b16 %v373
      %v506 = vunpack.c.l.b16 %v374
      %v507 = vunpack.c.l.b16 %v375
      %v508 = vunpack.c.l.b16 %v376
      %v509 = vunpack.c.l.b16 %v377
      %v510 = vunpack.c.l.b16 %v378
      %v511 = vunpack.c.l.b16 %v379
      %v512 = vunpack.c.l.b16 %v380
      %v513 = vunpack.c.l.b16 %v381
      %v514 = vunpack.c.l.b16 %v382
      %v515 = vunpack.c.l.b16 %v383
      %v516 = vunpack.c.l.b16 %v384
      %v517 = vunpack.c.l.b16 %v385
      %v518 = vunpack.c.l.b16 %v386
      %v519 = vunpack.c.l.b16 %v387
      %v520 = vunpack.c.l.b16 %v388
      %v521 = vunpack.c.l.b16 %v389
      %v522 = vunpack.c.l.b16 %v390
      %v523 = vunpack.c.l.b16 %v391
      %v524 = vunpack.c.l.b16 %v392
      %v525 = vunpack.c.l.b16 %v393
      %v526 = vunpack.c.l.b16 %v394
      %v527 = vunpack.c.l.b16 %v395
      %v528 = vunpack.c.l.b16 %v396
      %v529 = vunpack.c.l.b16 %v397
      %v530 = vunpack.c.l.b16 %v398
      %v531 = vunpack.c.l.b16 %v399
      %v532 = vpack.c.b16 %v497, %v496
      %v533 = vpack.c.b16 %v499, %v498
      %v534 = vpack.c.b16 %v501, %v500
      %v535 = vpack.c.b16 %v503, %v502
      %v536 = vpack.c.b16 %v505, %v504
      %v537 = vpack.c.b16 %v507, %v506
      %v538 = vpack.c.b16 %v509, %v508
      %v539 = vpack.c.b16 %v511, %v510
      %v540 = vpack.c.b16 %v513, %v512
      %v541 = vpack.c.b16 %v515, %v514
      %v542 = vpack.c.b16 %v517, %v516
      %v543 = vpack.c.b16 %v519, %v518
      %v544 = vpack.c.b16 %v521, %v520
      %v545 = vpack.c.b16 %v523, %v522
      %v546 = vpack.c.b16 %v525, %v524
      %v547 = vpack.c.b16 %v527, %v526
      %v548 = vpack.c.b16 %v529, %v528
      %v549 = vpack.c.b16 %v531, %v530
      %vm568 = vcmask 261120
      %v570 = vsel %vm568, %v442, 0
      %v573 = vsel %vm568, %v445, 0
      %v576 = vsel %vm568, %v448, 0
      %v579 = vsel %vm568, %v451, 0
      %581 = vmatprep.subr.bf16.mxu0 0
      %582 = vmatpush1.bf16.msra.mxu0 %v532
      %583 = vmatprep.subr.bf16.mxu0 0
      %584 = vmatpush1.bf16.msra.mxu0 %v533
      %585 = vmatprep.subr.bf16.mxu0 0
      %586 = vmatpush1.bf16.msra.mxu0 %v534
      %587 = vmatprep.subr.bf16.mxu0 0
      %588 = vmatpush1.bf16.msra.mxu0 %v535
      %589 = vmatprep.subr.bf16.mxu0 0
      %590 = vmatpush1.bf16.msra.mxu0 %v536
      %591 = vmatprep.subr.bf16.mxu0 0
      %592 = vmatpush1.bf16.msra.mxu0 %v537
      %593 = vmatprep.subr.bf16.mxu0 0
      %594 = vmatpush1.bf16.msra.mxu0 %v538
      %595 = vmatprep.subr.bf16.mxu0 0
      %596 = vmatpush1.bf16.msra.mxu0 %v539
      %597 = vmatprep.subr.bf16.mxu0 0
      %598 = vmatpush1.bf16.msra.mxu0 %v540
      %599 = vmatprep.subr.bf16.mxu0 0
      %600 = vmatpush1.bf16.msra.mxu0 %v541
      %601 = vmatprep.subr.bf16.mxu0 0
      %602 = vmatpush1.bf16.msra.mxu0 %v542
      %603 = vmatprep.subr.bf16.mxu0 0
      %604 = vmatpush1.bf16.msra.mxu0 %v543
      %605 = vmatprep.subr.bf16.mxu0 0
      %606 = vmatpush1.bf16.msra.mxu0 %v544
      %607 = vmatprep.subr.bf16.mxu0 0
      %608 = vmatpush1.bf16.msra.mxu0 %v545
      %609 = vmatprep.subr.bf16.mxu0 0
      %610 = vmatpush1.bf16.msra.mxu0 %v546
      %611 = vmatprep.subr.bf16.mxu0 0
      %612 = vmatpush1.bf16.msra.mxu0 %v547
      %613 = vmatprep.mubr.bf16.mxu0 %v441
      %614 = vmatmul.mubr.bf16.gmra.mrb[0].mxu0 %v440
      %v615 = vpop.f32.mrb[0].mxu0
      %v616 = vadd.f32 0.0, %v615
      %v617 = vpop.f32.mrb[0].mxu0
      %v618 = vpop.f32.mrb[0].mxu0
      %v619 = vadd.f32 0.0, %v618
      %v620 = vpop.f32.mrb[0].mxu0
      %621 = vmatprep.mubr.bf16.mxu0 %v444
      %622 = vmatmul.mubr.bf16.gmra.mrb[0].mxu0 %v443
      %v623 = vpop.f32.mrb[0].mxu0
      %v624 = vadd.f32 0.0, %v623
      %v625 = vpop.f32.mrb[0].mxu0
      %v626 = vpop.f32.mrb[0].mxu0
      %v627 = vadd.f32 0.0, %v626
      %v628 = vpop.f32.mrb[0].mxu0
      %629 = vmatprep.mubr.bf16.mxu0 %v447
      %630 = vmatmul.mubr.bf16.gmra.mrb[0].mxu0 %v446
      %v631 = vpop.f32.mrb[0].mxu0
      %v632 = vadd.f32 0.0, %v631
      %v633 = vpop.f32.mrb[0].mxu0
      %v634 = vpop.f32.mrb[0].mxu0
      %v635 = vadd.f32 0.0, %v634
      %v636 = vpop.f32.mrb[0].mxu0
      %637 = vmatprep.mubr.bf16.mxu0 %v450
      %638 = vmatmul.mubr.bf16.gmra.mrb[0].mxu0 %v449
      %v639 = vpop.f32.mrb[0].mxu0
      %v640 = vadd.f32 0.0, %v639
      %v641 = vpop.f32.mrb[0].mxu0
      %v642 = vpop.f32.mrb[0].mxu0
      %v643 = vadd.f32 0.0, %v642
      %v644 = vpop.f32.mrb[0].mxu0
      %645 = vdwg.mxu0
      %646 = vmatprep.subr.bf16.mxu0 0
      %647 = vmatpush1.bf16.msra.mxu0 %v548
      %648 = vmatprep.subr.bf16.mxu0 0
      %649 = vmatpush1.bf16.msra.mxu0 %v549
      %650 = vmatprep.subr.bf16.mxu0 0
      %651 = vmatpush1.bf16.msra.mxu0 0
      %652 = vmatprep.subr.bf16.mxu0 0
      %653 = vmatpush1.bf16.msra.mxu0 0
      %654 = vmatprep.subr.bf16.mxu0 0
      %655 = vmatpush1.bf16.msra.mxu0 0
      %656 = vmatprep.subr.bf16.mxu0 0
      %657 = vmatpush1.bf16.msra.mxu0 0
      %658 = vmatprep.subr.bf16.mxu0 0
      %659 = vmatpush1.bf16.msra.mxu0 0
      %660 = vmatprep.subr.bf16.mxu0 0
      %661 = vmatpush1.bf16.msra.mxu0 0
      %662 = vmatprep.subr.bf16.mxu0 0
      %663 = vmatpush1.bf16.msra.mxu0 0
      %664 = vmatprep.subr.bf16.mxu0 0
      %665 = vmatpush1.bf16.msra.mxu0 0
      %666 = vmatprep.subr.bf16.mxu0 0
      %667 = vmatpush1.bf16.msra.mxu0 0
      %668 = vmatprep.subr.bf16.mxu0 0
      %669 = vmatpush1.bf16.msra.mxu0 0
      %670 = vmatprep.subr.bf16.mxu0 0
      %671 = vmatpush1.bf16.msra.mxu0 0
      %672 = vmatprep.subr.bf16.mxu0 0
      %673 = vmatpush1.bf16.msra.mxu0 0
      %674 = vmatprep.subr.bf16.mxu0 0
      %675 = vmatpush1.bf16.msra.mxu0 0
      %676 = vmatprep.subr.bf16.mxu0 0
      %677 = vmatpush1.bf16.msra.mxu0 0
      %678 = vmatprep.mubr.bf16.mxu0 0
      %679 = vmatmul.mubr.bf16.gmra.mrb[0].mxu0 %v570
      %v680 = vpop.f32.mrb[0].mxu0
      %v681 = vadd.f32 %v616, %v680
      %v682 = vpop.f32.mrb[0].mxu0
      %v683 = vpop.f32.mrb[0].mxu0
      %v684 = vadd.f32 %v619, %v683
      %v685 = vpop.f32.mrb[0].mxu0
      %686 = vmatprep.mubr.bf16.mxu0 0
      %687 = vmatmul.mubr.bf16.gmra.mrb[0].mxu0 %v573
      %v688 = vpop.f32.mrb[0].mxu0
      %v689 = vadd.f32 %v624, %v688
      %v690 = vpop.f32.mrb[0].mxu0
      %v691 = vpop.f32.mrb[0].mxu0
      %v692 = vadd.f32 %v627, %v691
      %v693 = vpop.f32.mrb[0].mxu0
      %694 = vmatprep.mubr.bf16.mxu0 0
      %695 = vmatmul.mubr.bf16.gmra.mrb[0].mxu0 %v576
      %v696 = vpop.f32.mrb[0].mxu0
      %v697 = vadd.f32 %v632, %v696
      %v698 = vpop.f32.mrb[0].mxu0
      %v699 = vpop.f32.mrb[0].mxu0
      %v700 = vadd.f32 %v635, %v699
      %v701 = vpop.f32.mrb[0].mxu0
      %702 = vmatprep.mubr.bf16.mxu0 0
      %703 = vmatmul.mubr.bf16.gmra.mrb[0].mxu0 %v579
      %v704 = vpop.f32.mrb[0].mxu0
      %v705 = vadd.f32 %v640, %v704
      %v706 = vpop.f32.mrb[0].mxu0
      %v707 = vpop.f32.mrb[0].mxu0
      %v708 = vadd.f32 %v643, %v707
      %v709 = vpop.f32.mrb[0].mxu0
      %710 = vdwg.mxu0
      %v711 = vld [vmem:[%s333] sm:$0x1]
      %v713 = vlaneseq
      %v714 = vshrl.u32 %v713, 7
      %v715 = vsub.s32 0, %v714
      %v716 = vrot.slane %v711, %v715
      %v718 = vmul.f32 %v681, %v716
      %v719 = vmul.f32 %v684, %v716
      %v720 = vmul.f32 %v689, %v716
      %v721 = vmul.f32 %v692, %v716
      %v722 = vmul.f32 %v697, %v716
      %v723 = vmul.f32 %v700, %v716
      %v724 = vmul.f32 %v705, %v716
      %v725 = vmul.f32 %v708, %v716
      %v726 = vld [vmem:[%s3] sm:$0x1]
      %v728 = vlaneseq
      %v729 = vshrl.u32 %v728, 7
      %v730 = vsub.s32 0, %v729
      %v731 = vrot.slane %v726, %v730
      %v733 = vadd.f32 %v718, %v731
      %v734 = vadd.f32 %v719, %v731
      %v735 = vadd.f32 %v720, %v731
      %v736 = vadd.f32 %v721, %v731
      %v737 = vadd.f32 %v722, %v731
      %v738 = vadd.f32 %v723, %v731
      %v739 = vadd.f32 %v724, %v731
      %v740 = vadd.f32 %v725, %v731
      %vm741 = vcmp.ge.f32.partialorder %v733, 0.0
      %vm742 = vcmp.ge.f32.partialorder %v734, 0.0
      %vm743 = vcmp.ge.f32.partialorder %v735, 0.0
      %vm744 = vcmp.ge.f32.partialorder %v736, 0.0
      %vm745 = vcmp.ge.f32.partialorder %v737, 0.0
      %vm746 = vcmp.ge.f32.partialorder %v738, 0.0
      %vm747 = vcmp.ge.f32.partialorder %v739, 0.0
      %vm748 = vcmp.ge.f32.partialorder %v740, 0.0
      %v749 = vmul.f32 %v733, 0.2
      %v750 = vmul.f32 %v734, 0.2
      %v751 = vmul.f32 %v735, 0.2
      %v752 = vmul.f32 %v736, 0.2
      %v753 = vmul.f32 %v737, 0.2
      %v754 = vmul.f32 %v738, 0.2
      %v755 = vmul.f32 %v739, 0.2
      %v756 = vmul.f32 %v740, 0.2
      %v757 = vsel %vm741, %v733, %v749
      %v758 = vsel %vm742, %v734, %v750
      %v759 = vsel %vm743, %v735, %v751
      %v760 = vsel %vm744, %v736, %v752
      %v761 = vsel %vm745, %v737, %v753
      %v762 = vsel %vm746, %v738, %v754
      %v763 = vsel %vm747, %v739, %v755
      %v764 = vsel %vm748, %v740, %v756
      %v765 = vmul.f32 %v757, 1.4142135
      %v766 = vmul.f32 %v758, 1.4142135
      %v767 = vmul.f32 %v759, 1.4142135
      %v768 = vmul.f32 %v760, 1.4142135
      %v769 = vmul.f32 %v761, 1.4142135
      %v770 = vmul.f32 %v762, 1.4142135
      %v771 = vmul.f32 %v763, 1.4142135
      %v772 = vmul.f32 %v764, 1.4142135
      %773 = vst [vmem:[%s341] sm:$0xff] %v765
      %774 = vst [vmem:[%s341 + $0x8] sm:$0xff] %v766
      %775 = vst [vmem:[%s341 + $0x10] sm:$0xff] %v767
      %776 = vst [vmem:[%s341 + $0x18] sm:$0xff] %v768
      %777 = vst [vmem:[%s341 + $0x20] sm:$0xff] %v769
      %778 = vst [vmem:[%s341 + $0x28] sm:$0xff] %v770
      %779 = vst [vmem:[%s341 + $0x30] sm:$0xff] %v771
      %780 = vst [vmem:[%s341 + $0x38] sm:$0xff] %v772
      %v781 = vld [vmem:[%s336] sm:$0x1]
      %v783 = vlaneseq
      %v784 = vshrl.u32 %v783, 7
      %v785 = vsub.s32 0, %v784
      %v786 = vrot.slane %v781, %v785
      %v788 = vmul.f32 %v765, %v786
      %v789 = vmul.f32 %v766, %v786
      %v790 = vmul.f32 %v767, %v786
      %v791 = vmul.f32 %v768, %v786
      %v792 = vmul.f32 %v769, %v786
      %v793 = vmul.f32 %v770, %v786
      %v794 = vmul.f32 %v771, %v786
      %v795 = vmul.f32 %v772, %v786
      %v796 = vpack.c.bf16 %v789, %v788
      %v797 = vpack.c.bf16 %v791, %v790
      %v798 = vpack.c.bf16 %v793, %v792
      %v799 = vpack.c.bf16 %v795, %v794
      %v800 = vld [vmem:[%s5] sm:$0xf]
      %v801 = vld [vmem:[%s5 + $0x4] sm:$0xf]
      %v802 = vld [vmem:[%s5 + $0x8] sm:$0xf]
      %v803 = vld [vmem:[%s5 + $0xc] sm:$0xf]
      %v804 = vld [vmem:[%s5 + $0x10] sm:$0xf]
      %v805 = vld [vmem:[%s5 + $0x14] sm:$0xf]
      %v806 = vld [vmem:[%s5 + $0x18] sm:$0xf]
      %v807 = vld [vmem:[%s5 + $0x1c] sm:$0xf]
      %v808 = vld [vmem:[%s5 + $0x20] sm:$0xf]
      %v809 = vld [vmem:[%s5 + $0x24] sm:$0xf]
      %v810 = vld [vmem:[%s5 + $0x28] sm:$0xf]
      %v811 = vld [vmem:[%s5 + $0x2c] sm:$0xf]
      %v812 = vld [vmem:[%s5 + $0x30] sm:$0xf]
      %v813 = vld [vmem:[%s5 + $0x34] sm:$0xf]
      %v814 = vld [vmem:[%s5 + $0x38] sm:$0xf]
      %v815 = vld [vmem:[%s5 + $0x3c] sm:$0xf]
      %v816 = vld [vmem:[%s6] sm:$0x1]
      %v818 = vlaneseq
      %v819 = vshrl.u32 %v818, 7
      %v820 = vsub.s32 0, %v819
      %v821 = vrot.slane %v816, %v820
      %v839 = vunpack.c.l.b16 %v800
      %v840 = vunpack.c.l.b16 %v801
      %v841 = vunpack.c.l.b16 %v802
      %v842 = vunpack.c.l.b16 %v803
      %v843 = vunpack.c.l.b16 %v804
      %v844 = vunpack.c.l.b16 %v805
      %v845 = vunpack.c.l.b16 %v806
      %v846 = vunpack.c.l.b16 %v807
      %v847 = vunpack.c.l.b16 %v808
      %v848 = vunpack.c.l.b16 %v809
      %v849 = vunpack.c.l.b16 %v810
      %v850 = vunpack.c.l.b16 %v811
      %v851 = vunpack.c.l.b16 %v812
      %v852 = vunpack.c.l.b16 %v813
      %v853 = vunpack.c.l.b16 %v814
      %v854 = vunpack.c.l.b16 %v815
      %v855 = vpack.c.b16 %v840, %v839
      %v856 = vpack.c.b16 %v842, %v841
      %v857 = vpack.c.b16 %v844, %v843
      %v858 = vpack.c.b16 %v846, %v845
      %v859 = vpack.c.b16 %v848, %v847
      %v860 = vpack.c.b16 %v850, %v849
      %v861 = vpack.c.b16 %v852, %v851
      %v862 = vpack.c.b16 %v854, %v853
      %871 = vmatprep.subr.bf16.mxu0 0
      %872 = vmatpush1.bf16.msra.mxu0 %v855
      %873 = vmatprep.subr.bf16.mxu0 0
      %874 = vmatpush1.bf16.msra.mxu0 %v856
      %875 = vmatprep.subr.bf16.mxu0 0
      %876 = vmatpush1.bf16.msra.mxu0 %v857
      %877 = vmatprep.subr.bf16.mxu0 0
      %878 = vmatpush1.bf16.msra.mxu0 %v858
      %879 = vmatprep.subr.bf16.mxu0 0
      %880 = vmatpush1.bf16.msra.mxu0 %v859
      %881 = vmatprep.subr.bf16.mxu0 0
      %882 = vmatpush1.bf16.msra.mxu0 %v860
      %883 = vmatprep.subr.bf16.mxu0 0
      %884 = vmatpush1.bf16.msra.mxu0 %v861
      %885 = vmatprep.subr.bf16.mxu0 0
      %886 = vmatpush1.bf16.msra.mxu0 %v862
      %887 = vmatprep.subr.bf16.mxu0 0
      %888 = vmatpush1.bf16.msra.mxu0 0
      %889 = vmatprep.subr.bf16.mxu0 0
      %890 = vmatpush1.bf16.msra.mxu0 0
      %891 = vmatprep.subr.bf16.mxu0 0
      %892 = vmatpush1.bf16.msra.mxu0 0
      %893 = vmatprep.subr.bf16.mxu0 0
      %894 = vmatpush1.bf16.msra.mxu0 0
      %895 = vmatprep.subr.bf16.mxu0 0
      %896 = vmatpush1.bf16.msra.mxu0 0
      %897 = vmatprep.subr.bf16.mxu0 0
      %898 = vmatpush1.bf16.msra.mxu0 0
      %899 = vmatprep.subr.bf16.mxu0 0
      %900 = vmatpush1.bf16.msra.mxu0 0
      %901 = vmatprep.subr.bf16.mxu0 0
      %902 = vmatpush1.bf16.msra.mxu0 0
      %903 = vmatprep.mubr.bf16.mxu0 0
      %904 = vmatmul.mubr.bf16.gmra.mrb[0].mxu0 %v796
      %v905 = vpop.f32.mrb[0].mxu0
      %v906 = vadd.f32 %v821, %v905
      %v907 = vpop.f32.mrb[0].mxu0
      %v908 = vpop.f32.mrb[0].mxu0
      %v909 = vadd.f32 %v821, %v908
      %v910 = vpop.f32.mrb[0].mxu0
      %911 = vmatprep.mubr.bf16.mxu0 0
      %912 = vmatmul.mubr.bf16.gmra.mrb[0].mxu0 %v797
      %v913 = vpop.f32.mrb[0].mxu0
      %v914 = vadd.f32 %v821, %v913
      %v915 = vpop.f32.mrb[0].mxu0
      %v916 = vpop.f32.mrb[0].mxu0
      %v917 = vadd.f32 %v821, %v916
      %v918 = vpop.f32.mrb[0].mxu0
      %919 = vmatprep.mubr.bf16.mxu0 0
      %920 = vmatmul.mubr.bf16.gmra.mrb[0].mxu0 %v798
      %v921 = vpop.f32.mrb[0].mxu0
      %v922 = vadd.f32 %v821, %v921
      %v923 = vpop.f32.mrb[0].mxu0
      %v924 = vpop.f32.mrb[0].mxu0
      %v925 = vadd.f32 %v821, %v924
      %v926 = vpop.f32.mrb[0].mxu0
      %927 = vmatprep.mubr.bf16.mxu0 0
      %928 = vmatmul.mubr.bf16.gmra.mrb[0].mxu0 %v799
      %v929 = vpop.f32.mrb[0].mxu0
      %v930 = vadd.f32 %v821, %v929
      %v931 = vpop.f32.mrb[0].mxu0
      %v932 = vpop.f32.mrb[0].mxu0
      %v933 = vadd.f32 %v821, %v932
      %v934 = vpop.f32.mrb[0].mxu0
      %935 = vdwg.mxu0
      %936 = vst [vmem:[%s346] sm:$0xff] %v906
      %937 = vst [vmem:[%s346 + $0x8] sm:$0xff] %v909
      %938 = vst [vmem:[%s346 + $0x10] sm:$0xff] %v914
      %939 = vst [vmem:[%s346 + $0x18] sm:$0xff] %v917
      %940 = vst [vmem:[%s346 + $0x20] sm:$0xff] %v922
      %941 = vst [vmem:[%s346 + $0x28] sm:$0xff] %v925
      %942 = vst [vmem:[%s346 + $0x30] sm:$0xff] %v930
      %943 = vst [vmem:[%s346 + $0x38] sm:$0xff] %v933
      %p944 = scmp.lt.s32.totalorder %s20, 1
      %s945 = scalar_select %p944, %s20, 1
      %s946 = smul.addr %s945, 8
      %s947 = smul.addr %s946, 8
      %s948 = scalar_lea.vmem %s7, %s947
      %p949 = scmp.lt.s32.totalorder %s20, 1
      %s950 = scalar_select %p949, %s20, 1
      %s951 = smul.addr %s950, 8
      %s952 = smul.addr %s951, 8
      %s953 = scalar_lea.vmem %s8, %s952
      // Predicated region
      $region49: #{_lambda_.3} parent=47 // pred_check
        %p954 = pneg %p200
      $region50: #{_lambda_.3} parent=47 // pred_check_branch
        %956 = sbr.rel (%p954) target = $region52
      $region51: #{_lambda_.3} parent=47 // pred_region
        _
      $region52: #{_lambda_.3} parent=47 // pred_fallthru
        _
      // Predicated region
      $region53: #{_lambda_.3} parent=47 // pred_check
        %p957 = pneg %p226
      $region54: #{_lambda_.3} parent=47 // pred_check_branch
        %959 = sbr.rel (%p957) target = $region56
      $region55: #{_lambda_.3} parent=47 // pred_region
        _
      $region56: #{_lambda_.3} parent=47 // pred_fallthru
        _
    $region48: #{_lambda_.3} parent=5 // pred_fallthru
      _
    %p960 = scmp.le.s32.totalorder 2, %s15
    // Predicated region
    $region57: #{_lambda_.3} parent=5 // pred_check
      %p961 = pneg %p960
    $region58: #{_lambda_.3} parent=5 // pred_check_branch
      %963 = sbr.rel (%p961) target = $region60
    $region59: #{_lambda_.3} parent=5 // pred_region
      %s964 = ssub.s32 %s15, 2
      // Predicated region
      $region61: #{_lambda_.3} parent=59 // pred_check
        %p965 = pneg %p206
      $region62: #{_lambda_.3} parent=59 // pred_check_branch
        %967 = sbr.rel (%p965) target = $region64
      $region63: #{_lambda_.3} parent=59 // pred_region
        %p968 = scmp.lt.s32.totalorder %s21, 1
        %s969 = scalar_select %p968, %s21, 1
        %s970 = smul.addr %s969, 8
        %s971 = smul.addr %s970, 8
        %s972 = scalar_lea.vmem %s7, %s971
      $region64: #{_lambda_.3} parent=59 // pred_fallthru
        _
      // Predicated region
      $region65: #{_lambda_.3} parent=59 // pred_check
        %p973 = pneg %p232
      $region66: #{_lambda_.3} parent=59 // pred_check_branch
        %975 = sbr.rel (%p973) target = $region68
      $region67: #{_lambda_.3} parent=59 // pred_region
        %p976 = scmp.lt.s32.totalorder %s21, 1
        %s977 = scalar_select %p976, %s21, 1
        %s978 = smul.addr %s977, 8
        %s979 = smul.addr %s978, 8
        %s980 = scalar_lea.vmem %s8, %s979
      $region68: #{_lambda_.3} parent=59 // pred_fallthru
        _
    $region60: #{_lambda_.3} parent=5 // pred_fallthru
      _
  $region6: #{_lambda_.3} parent=0 // loop_footer
    %s19 = sadd.s32 1, %s15
  $region7: #{_lambda_.3} parent=0 // loop_footer_branch
    %14 = sbr.rel target = $region3
  $region8: #{_lambda_.3} parent=0 // loop_exit
    _

</llo_original>
